<compile_context>
chip_gen: v6e
topology: v6e:2x2x1
jax: 0.10.0
libtpu: 0.0.40
codegen_flags: <defaults>
</compile_context>

<pallas_src>
import numpy as np
import jax
import jax.numpy as jnp
from jax import lax
from jax.experimental import pallas as pl
from jax.experimental.pallas import tpu as pltpu

CIN = 4                        # input channels
CR, CC, C1, CB = 8, 8, 16, 24  # conv output channels
KR_H = 20                      # convR kernel (20, 1)
KC_W = 10                      # convC kernel (1, 10)


def _fused_cnn_kernel(H, W, WRP):
    """One grid step = one batch sample; all intermediates stay in VMEM."""
    HW = H * W
    HR = H - (KR_H - 1)          # convR output height
    WR = HR * W                  # convR flattened (valid) width
    Z2 = 2 * W + 16              # zero lane-extension for pad=2 taps (>= 2W+2)
    Z1 = W + 16                  # zero lane-extension for pad=1 taps (>= W+1)
    f32 = jnp.float32

    def kernel(x_ref, m_ref, wR_ref, bR_ref, wC_ref, bC_ref, w1_ref, b1_ref,
               wB_ref, bB_ref, oR_ref, oC_ref, oB_ref):
        x = x_ref[0]                       # (CIN, H*W): flattened NCHW sample
        masks = m_ref[...]                 # (6, H*W) hoisted horizontal masks

        def zext(v, z):                    # in-VMEM zero padding along lanes
            zeros = jnp.zeros((v.shape[0], z), f32)
            return jnp.concatenate([zeros, v, zeros], axis=1)

        # ---- convR: Conv2d(4, 8, (20, 1)) + ReLU -----------------------------
        # KW=1, no pad -> single (8,80)x(80,HR*W) matmul; output padded to a
        # 128-multiple lane width so the store is unmasked.
        pR = jnp.concatenate(
            [x[:, kh * W: kh * W + WR] for kh in range(KR_H)], axis=0)
        oR = jnp.dot(wR_ref[...], pR, preferred_element_type=f32) + bR_ref[...]
        oR = jnp.maximum(oR, 0.0)
        if WRP > WR:
            oR = jnp.concatenate([oR, jnp.zeros((CR, WRP - WR), f32)], axis=1)
        oR_ref[0] = oR                                   # already NCHW-flat

        # ---- convC: Conv2d(4, 8, (1, 10)) + ReLU -----------------------------
        # Computed full-width (lane-dense store); columns >= WC hold row-wrap
        # garbage and are dropped by the wrapper's reshape/slice.
        xe = zext(x, Z2)
        pC = jnp.concatenate(
            [xe[:, Z2 + kw: Z2 + kw + HW] for kw in range(KC_W)], axis=0)
        oC = jnp.dot(wC_ref[...], pC, preferred_element_type=f32) + bC_ref[...]
        oC_ref[0] = jnp.maximum(oC, 0.0)

        # ---- conv1: Conv2d(4, 16, 5, padding=2) + ReLU -----------------------
        # Vertical padding comes for free from the zero lane-extension; the
        # horizontal wrap of off-center column taps is masked once per
        # kw-group.  K-order is (kw, kh, ci) to match to2d().
        # mask rows: 0..3 -> pad=2 kw=0,1,3,4 ; 4..5 -> pad=1 kw=0,2
        m1 = {0: masks[0:1], 1: masks[1:2], 3: masks[2:3], 4: masks[3:4]}
        groups = []
        for kw in range(5):
            off0 = Z2 + (kw - 2)
            g = jnp.concatenate(
                [xe[:, off0 + (kh - 2) * W: off0 + (kh - 2) * W + HW]
                 for kh in range(5)], axis=0)            # (5*CIN, HW)
            if kw != 2:
                g = g * m1[kw]
            groups.append(g)
        p1 = jnp.concatenate(groups, axis=0)             # (100, HW)
        x1 = jnp.maximum(
            jnp.dot(w1_ref[...], p1, preferred_element_type=f32) + b1_ref[...],
            0.0)                                         # stays in VMEM

        # ---- block1: Conv2d(16, 24, 3, padding=1) -> MaxPool2d(2) -> ReLU ----
        x1e = zext(x1, Z1)
        mB = {0: masks[4:5], 2: masks[5:6]}
        groups = []
        for kw in range(3):
            off0 = Z1 + (kw - 1)
            g = jnp.concatenate(
                [x1e[:, off0 + (kh - 1) * W: off0 + (kh - 1) * W + HW]
                 for kh in range(3)], axis=0)            # (3*C1, HW)
            if kw != 1:
                g = g * mB[kw]
            groups.append(g)
        pB = jnp.concatenate(groups, axis=0)             # (144, HW)
        oB = jnp.dot(wB_ref[...], pB, preferred_element_type=f32) + bB_ref[...]
        # 2x2 / stride-2 max pool over the full HW lane width: plain VPU maxima
        # of shifted slices (zero-extended so every slice is in range).  Pooled
        # cell (ph, pw) sits at lane 2*ph*W + 2*pw; all four of its source
        # lanes are < HW, so the zero tail never affects gathered cells.  Lanes
        # that are not gathered by the wrapper's ::2,::2 slice hold junk.
        oBe = jnp.concatenate([oB, jnp.zeros((CB, W + 1), f32)], axis=1)
        pooled = jnp.maximum(
            jnp.maximum(oBe[:, :HW], oBe[:, 1:HW + 1]),
            jnp.maximum(oBe[:, W:HW + W], oBe[:, W + 1:HW + W + 1]))
        oB_ref[0] = jnp.maximum(pooled, 0.0)             # (CB, HW), lane-dense

    return kernel


def _mask_table(H, W):
    """Host-side (6, H*W) f32 table of the distinct horizontal validity masks:
    rows 0..3 -> pad=2, kw in (0,1,3,4); rows 4..5 -> pad=1, kw in (0,2)."""
    col = np.tile(np.arange(W, dtype=np.int64), H)

    def m(pad, kw):
        lo, hi = pad - kw, W - 1 + pad - kw
        return ((col >= lo) & (col <= hi)).astype(np.float32)

    return np.stack([m(2, 0), m(2, 1), m(2, 3), m(2, 4), m(1, 0), m(1, 2)], 0)


@jax.jit
def cnn_forward(state, params):
    """state: (B, 4, H, W) NCHW. Needs H >= 20, W >= 10, H and W even (pool)."""
    B, C, H, W = state.shape
    assert C == CIN and H >= KR_H and W >= KC_W
    assert H % 2 == 0 and W % 2 == 0, "MaxPool2d(2) path assumes even H, W"
    HW = H * W
    HR, WC = H - (KR_H - 1), W - (KC_W - 1)
    WR = HR * W
    WRP = ((WR + 127) // 128) * 128          # lane-dense convR output width
    masks = jnp.asarray(_mask_table(H, W))

    full = lambda s: pl.BlockSpec(s, lambda b: (0,) * len(s))
    per_b = lambda s: pl.BlockSpec((1,) + s, lambda b: (b,) + (0,) * len(s))

    oR, oC, oB = pl.pallas_call(
        _fused_cnn_kernel(H, W, WRP),
        out_shape=(
            jax.ShapeDtypeStruct((B, CR, WRP), jnp.float32),
            jax.ShapeDtypeStruct((B, CC, HW), jnp.float32),
            jax.ShapeDtypeStruct((B, CB, HW), jnp.float32),
        ),
        grid=(B,),
        in_specs=[
            per_b((CIN, HW)),                       # x (flattened per sample)
            full((6, HW)),                          # hoisted mask table
            full((CR, KR_H * CIN)), full((CR, 1)),  # convR
            full((CC, KC_W * CIN)), full((CC, 1)),  # convC
            full((C1, 25 * CIN)), full((C1, 1)),    # conv1
            full((CB, 9 * C1)), full((CB, 1)),      # block1 conv
        ],
        out_specs=(
            per_b((CR, WRP)),
            per_b((CC, HW)),
            per_b((CB, HW)),
        ),
        compiler_params=pltpu.CompilerParams(
            dimension_semantics=("parallel",)),     # v7x: one sample per core
    )(state.reshape(B, C, HW), masks,
      params["wR2"], params["bR2"], params["wC2"], params["bC2"],
      params["w12"], params["b12"], params["wB2"], params["bB2"])

    # Cheap wrapper-side gathers (fused by XLA into the concat):
    xR = oR[:, :, :WR].reshape(B, 1, -1)                         # drop lane pad
    xC = oC.reshape(B, CC, H, W)[:, :, :, :WC].reshape(B, 1, -1)  # drop wrap cols
    xB = oB.reshape(B, CB, H, W)[:, :, ::2, ::2].reshape(B, 1, -1)  # pool gather
    return jnp.concatenate([xR, xC, xB], axis=2)


def init_params(key):
    ks = jax.random.split(key, 8)

    def conv_init(kw_, kb_, kh, kwid, cin, cout):
        fan_in = cin * kh * kwid
        bound = 1.0 / (fan_in ** 0.5)
        w = jax.random.uniform(kw_, (kh, kwid, cin, cout), jnp.float32,
                               -bound, bound)
        b = jax.random.uniform(kb_, (cout,), jnp.float32, -bound, bound)
        return w, b

    wR, bR = conv_init(ks[0], ks[1], 20, 1, 4, 8)    # convR: Conv2d(4, 8, (20, 1))
    wC, bC = conv_init(ks[2], ks[3], 1, 10, 4, 8)    # convC: Conv2d(4, 8, (1, 10))
    w1, b1 = conv_init(ks[4], ks[5], 5, 5, 4, 16)    # conv1: Conv2d(4, 16, 5, p=2)
    wB, bB = conv_init(ks[6], ks[7], 3, 3, 16, 24)   # block1: Conv2d(16, 24, 3, p=1)

    def to2d(w):  # (KH, KW, Cin, Cout) HWIO -> (Cout, KW*KH*Cin), K-order (kw,kh,ci)
        kh, kw, ci, co = w.shape
        return jnp.transpose(w, (1, 0, 2, 3)).reshape(kw * kh * ci, co).T

    p = dict(wR=wR, bR=bR, wC=wC, bC=bC, w1=w1, b1=b1, wB=wB, bB=bB)
    p.update(wR2=to2d(wR), bR2=bR.reshape(-1, 1),
             wC2=to2d(wC), bC2=bC.reshape(-1, 1),
             w12=to2d(w1), b12=b1.reshape(-1, 1),
             wB2=to2d(wB), bB2=bB.reshape(-1, 1))
    return p


# ---------------- pure-JAX reference (for correctness check) ----------------
def _conv_ref(x, w, b, padding):
    y = lax.conv_general_dilated(
        x, w, (1, 1),
        [(padding[0], padding[0]), (padding[1], padding[1])],
        dimension_numbers=("NHWC", "HWIO", "NHWC"))
    return y + b.reshape(1, 1, 1, -1)


def cnn_forward_ref(state_nchw, p):
    B = state_nchw.shape[0]
    x = jnp.transpose(state_nchw, (0, 2, 3, 1))
    xR = jax.nn.relu(_conv_ref(x, p["wR"], p["bR"], (0, 0)))
    xC = jax.nn.relu(_conv_ref(x, p["wC"], p["bC"], (0, 0)))
    x1 = jax.nn.relu(_conv_ref(x, p["w1"], p["b1"], (2, 2)))
    xB = _conv_ref(x1, p["wB"], p["bB"], (1, 1))
    xB = lax.reduce_window(xB, -jnp.inf, lax.max,
                           (1, 2, 2, 1), (1, 2, 2, 1), "VALID")
    xB = jax.nn.relu(xB)
    flat = lambda t: jnp.transpose(t, (0, 3, 1, 2)).reshape(B, 1, -1)
    return jnp.concatenate([flat(xR), flat(xC), flat(xB)], axis=2)


if __name__ == "__main__":
    key = jax.random.PRNGKey(0)
    kp, kx = jax.random.split(key)
    params = init_params(kp)

    # H >= 20 needed for the (20,1) kernel, W >= 10 for the (1,10) kernel.
    B, C, H, W = 2, 4, 24, 16
    state = jax.random.normal(kx, (B, C, H, W), jnp.float32)

    out = jax.block_until_ready(cnn_forward(state, params))
    ref = jax.block_until_ready(cnn_forward_ref(state, params))

    expected_len = (CR * (H - 19) * W + CC * H * (W - 9)
                    + CB * (H // 2) * (W // 2))
    assert out.shape == (B, 1, expected_len), out.shape
    assert jnp.allclose(out, ref, atol=2e-4, rtol=2e-4), float(
        jnp.max(jnp.abs(out - ref)))
    print("KERNEL_OK")
</pallas_src>

<mosaic_0001>
module attributes {stable_mosaic.version = 11 : i64} {
  func.func @kernel(%arg0: i32, %arg1: memref<1x4x384xf32, #tpu.memory_space<vmem>>, %arg2: memref<6x384xf32, #tpu.memory_space<vmem>>, %arg3: memref<8x80xf32, #tpu.memory_space<vmem>>, %arg4: memref<8x1xf32, #tpu.memory_space<vmem>>, %arg5: memref<8x40xf32, #tpu.memory_space<vmem>>, %arg6: memref<8x1xf32, #tpu.memory_space<vmem>>, %arg7: memref<16x100xf32, #tpu.memory_space<vmem>>, %arg8: memref<16x1xf32, #tpu.memory_space<vmem>>, %arg9: memref<24x144xf32, #tpu.memory_space<vmem>>, %arg10: memref<24x1xf32, #tpu.memory_space<vmem>>, %arg11: memref<1x8x128xf32, #tpu.memory_space<vmem>>, %arg12: memref<1x8x384xf32, #tpu.memory_space<vmem>>, %arg13: memref<1x24x384xf32, #tpu.memory_space<vmem>>) attributes {dimension_semantics = [#tpu.dimension_semantics<parallel>], iteration_bounds = array<i64: 2>, scalar_prefetch = 0 : i64, scratch_operands = 0 : i64, tpu.core_type = #tpu.core_type<tc>, window_params = [{transform_indices = @transform_0, window_bounds = array<i64: 1, 4, 384>}, {pipeline_mode = #tpu.pipeline_mode<synchronous>, transform_indices = @transform_1, window_bounds = array<i64: 6, 384>}, {pipeline_mode = #tpu.pipeline_mode<synchronous>, transform_indices = @transform_2, window_bounds = array<i64: 8, 80>}, {pipeline_mode = #tpu.pipeline_mode<synchronous>, transform_indices = @transform_3, window_bounds = array<i64: 8, 1>}, {pipeline_mode = #tpu.pipeline_mode<synchronous>, transform_indices = @transform_4, window_bounds = array<i64: 8, 40>}, {pipeline_mode = #tpu.pipeline_mode<synchronous>, transform_indices = @transform_5, window_bounds = array<i64: 8, 1>}, {pipeline_mode = #tpu.pipeline_mode<synchronous>, transform_indices = @transform_6, window_bounds = array<i64: 16, 100>}, {pipeline_mode = #tpu.pipeline_mode<synchronous>, transform_indices = @transform_7, window_bounds = array<i64: 16, 1>}, {pipeline_mode = #tpu.pipeline_mode<synchronous>, transform_indices = @transform_8, window_bounds = array<i64: 24, 144>}, {pipeline_mode = #tpu.pipeline_mode<synchronous>, transform_indices = @transform_9, window_bounds = array<i64: 24, 1>}, {transform_indices = @transform_10, window_bounds = array<i64: 1, 8, 128>}, {transform_indices = @transform_11, window_bounds = array<i64: 1, 8, 384>}, {transform_indices = @transform_12, window_bounds = array<i64: 1, 24, 384>}]} {
    %c0 = arith.constant 0 : index
    %c0_0 = arith.constant 0 : index
    %c0_1 = arith.constant 0 : index
    %0 = vector.load %arg1[%c0, %c0_0, %c0_1] : memref<1x4x384xf32, #tpu.memory_space<vmem>>, vector<1x4x384xf32>
    %1 = vector.shape_cast %0 : vector<1x4x384xf32> to vector<4x384xf32>
    %c0_2 = arith.constant 0 : index
    %c0_3 = arith.constant 0 : index
    %2 = vector.load %arg2[%c0_2, %c0_3] : memref<6x384xf32, #tpu.memory_space<vmem>>, vector<6x384xf32>
    %3 = vector.extract_strided_slice %1 {offsets = [0, 0], sizes = [4, 80], strides = [1, 1]} : vector<4x384xf32> to vector<4x80xf32>
    %4 = vector.extract_strided_slice %1 {offsets = [0, 16], sizes = [4, 80], strides = [1, 1]} : vector<4x384xf32> to vector<4x80xf32>
    %5 = vector.extract_strided_slice %1 {offsets = [0, 32], sizes = [4, 80], strides = [1, 1]} : vector<4x384xf32> to vector<4x80xf32>
    %6 = vector.extract_strided_slice %1 {offsets = [0, 48], sizes = [4, 80], strides = [1, 1]} : vector<4x384xf32> to vector<4x80xf32>
    %7 = vector.extract_strided_slice %1 {offsets = [0, 64], sizes = [4, 80], strides = [1, 1]} : vector<4x384xf32> to vector<4x80xf32>
    %8 = vector.extract_strided_slice %1 {offsets = [0, 80], sizes = [4, 80], strides = [1, 1]} : vector<4x384xf32> to vector<4x80xf32>
    %9 = vector.extract_strided_slice %1 {offsets = [0, 96], sizes = [4, 80], strides = [1, 1]} : vector<4x384xf32> to vector<4x80xf32>
    %10 = vector.extract_strided_slice %1 {offsets = [0, 112], sizes = [4, 80], strides = [1, 1]} : vector<4x384xf32> to vector<4x80xf32>
    %11 = vector.extract_strided_slice %1 {offsets = [0, 128], sizes = [4, 80], strides = [1, 1]} : vector<4x384xf32> to vector<4x80xf32>
    %12 = vector.extract_strided_slice %1 {offsets = [0, 144], sizes = [4, 80], strides = [1, 1]} : vector<4x384xf32> to vector<4x80xf32>
    %13 = vector.extract_strided_slice %1 {offsets = [0, 160], sizes = [4, 80], strides = [1, 1]} : vector<4x384xf32> to vector<4x80xf32>
    %14 = vector.extract_strided_slice %1 {offsets = [0, 176], sizes = [4, 80], strides = [1, 1]} : vector<4x384xf32> to vector<4x80xf32>
    %15 = vector.extract_strided_slice %1 {offsets = [0, 192], sizes = [4, 80], strides = [1, 1]} : vector<4x384xf32> to vector<4x80xf32>
    %16 = vector.extract_strided_slice %1 {offsets = [0, 208], sizes = [4, 80], strides = [1, 1]} : vector<4x384xf32> to vector<4x80xf32>
    %17 = vector.extract_strided_slice %1 {offsets = [0, 224], sizes = [4, 80], strides = [1, 1]} : vector<4x384xf32> to vector<4x80xf32>
    %18 = vector.extract_strided_slice %1 {offsets = [0, 240], sizes = [4, 80], strides = [1, 1]} : vector<4x384xf32> to vector<4x80xf32>
    %19 = vector.extract_strided_slice %1 {offsets = [0, 256], sizes = [4, 80], strides = [1, 1]} : vector<4x384xf32> to vector<4x80xf32>
    %20 = vector.extract_strided_slice %1 {offsets = [0, 272], sizes = [4, 80], strides = [1, 1]} : vector<4x384xf32> to vector<4x80xf32>
    %21 = vector.extract_strided_slice %1 {offsets = [0, 288], sizes = [4, 80], strides = [1, 1]} : vector<4x384xf32> to vector<4x80xf32>
    %22 = vector.extract_strided_slice %1 {offsets = [0, 304], sizes = [4, 80], strides = [1, 1]} : vector<4x384xf32> to vector<4x80xf32>
    %23 = tpu.concatenate %3, %4, %5, %6, %7, %8, %9, %10, %11, %12, %13, %14, %15, %16, %17, %18 in 0 : vector<4x80xf32>, vector<4x80xf32>, vector<4x80xf32>, vector<4x80xf32>, vector<4x80xf32>, vector<4x80xf32>, vector<4x80xf32>, vector<4x80xf32>, vector<4x80xf32>, vector<4x80xf32>, vector<4x80xf32>, vector<4x80xf32>, vector<4x80xf32>, vector<4x80xf32>, vector<4x80xf32>, vector<4x80xf32> -> vector<64x80xf32>
    %24 = tpu.concatenate %19, %20, %21, %22 in 0 : vector<4x80xf32>, vector<4x80xf32>, vector<4x80xf32>, vector<4x80xf32> -> vector<16x80xf32>
    %25 = tpu.concatenate %23, %24 in 0 : vector<64x80xf32>, vector<16x80xf32> -> vector<80x80xf32>
    %c0_4 = arith.constant 0 : index
    %c0_5 = arith.constant 0 : index
    %26 = vector.load %arg3[%c0_4, %c0_5] : memref<8x80xf32, #tpu.memory_space<vmem>>, vector<8x80xf32>
    %cst = arith.constant dense<0.000000e+00> : vector<8x80xf32>
    %27 = tpu.matmul %26, %25, %cst {dimension_numbers = #tpu.dot_dimension_numbers<[1], [0], [0], [1], [0, 0, 1, 1], [], []>} : vector<8x80xf32>, vector<80x80xf32>, vector<8x80xf32> -> vector<8x80xf32>
    %c0_6 = arith.constant 0 : index
    %c0_7 = arith.constant 0 : index
    %28 = vector.load %arg4[%c0_6, %c0_7] : memref<8x1xf32, #tpu.memory_space<vmem>>, vector<8x1xf32>
    %29 = vector.broadcast %28 : vector<8x1xf32> to vector<8x80xf32>
    %30 = arith.addf %27, %29 : vector<8x80xf32>
    %cst_8 = arith.constant 0.000000e+00 : f32
    %31 = vector.broadcast %cst_8 : f32 to vector<8x80xf32>
    %32 = arith.maximumf %30, %31 : vector<8x80xf32>
    %cst_9 = arith.constant 0.000000e+00 : f32
    %33 = vector.broadcast %cst_9 : f32 to vector<8x48xf32>
    %34 = tpu.concatenate %32, %33 in 1 : vector<8x80xf32>, vector<8x48xf32> -> vector<8x128xf32>
    %c0_10 = arith.constant 0 : index
    %c0_11 = arith.constant 0 : index
    %c0_12 = arith.constant 0 : index
    %35 = vector.load %arg11[%c0_10, %c0_11, %c0_12] : memref<1x8x128xf32, #tpu.memory_space<vmem>>, vector<1x8x128xf32>
    %36 = vector.shape_cast %35 : vector<1x8x128xf32> to vector<8x128xf32>
    %37 = vector.shape_cast %34 : vector<8x128xf32> to vector<1x8x128xf32>
    tpu.vector_store %arg11[%c0_10, %c0_11, %c0_12], %37 {strides = array<i32>} : memref<1x8x128xf32, #tpu.memory_space<vmem>>, vector<1x8x128xf32>,
    %cst_13 = arith.constant 0.000000e+00 : f32
    %38 = vector.broadcast %cst_13 : f32 to vector<4x48xf32>
    %39 = tpu.concatenate %38, %1, %38 in 1 : vector<4x48xf32>, vector<4x384xf32>, vector<4x48xf32> -> vector<4x480xf32>
    %40 = vector.extract_strided_slice %39 {offsets = [0, 48], sizes = [4, 384], strides = [1, 1]} : vector<4x480xf32> to vector<4x384xf32>
    %41 = vector.extract_strided_slice %39 {offsets = [0, 49], sizes = [4, 384], strides = [1, 1]} : vector<4x480xf32> to vector<4x384xf32>
    %42 = vector.extract_strided_slice %39 {offsets = [0, 50], sizes = [4, 384], strides = [1, 1]} : vector<4x480xf32> to vector<4x384xf32>
    %43 = vector.extract_strided_slice %39 {offsets = [0, 51], sizes = [4, 384], strides = [1, 1]} : vector<4x480xf32> to vector<4x384xf32>
    %44 = vector.extract_strided_slice %39 {offsets = [0, 52], sizes = [4, 384], strides = [1, 1]} : vector<4x480xf32> to vector<4x384xf32>
    %45 = vector.extract_strided_slice %39 {offsets = [0, 53], sizes = [4, 384], strides = [1, 1]} : vector<4x480xf32> to vector<4x384xf32>
    %46 = vector.extract_strided_slice %39 {offsets = [0, 54], sizes = [4, 384], strides = [1, 1]} : vector<4x480xf32> to vector<4x384xf32>
    %47 = vector.extract_strided_slice %39 {offsets = [0, 55], sizes = [4, 384], strides = [1, 1]} : vector<4x480xf32> to vector<4x384xf32>
    %48 = vector.extract_strided_slice %39 {offsets = [0, 56], sizes = [4, 384], strides = [1, 1]} : vector<4x480xf32> to vector<4x384xf32>
    %49 = vector.extract_strided_slice %39 {offsets = [0, 57], sizes = [4, 384], strides = [1, 1]} : vector<4x480xf32> to vector<4x384xf32>
    %50 = tpu.concatenate %40, %41, %42, %43, %44, %45, %46, %47, %48, %49 in 0 : vector<4x384xf32>, vector<4x384xf32>, vector<4x384xf32>, vector<4x384xf32>, vector<4x384xf32>, vector<4x384xf32>, vector<4x384xf32>, vector<4x384xf32>, vector<4x384xf32>, vector<4x384xf32> -> vector<40x384xf32>
    %c0_14 = arith.constant 0 : index
    %c0_15 = arith.constant 0 : index
    %51 = vector.load %arg5[%c0_14, %c0_15] : memref<8x40xf32, #tpu.memory_space<vmem>>, vector<8x40xf32>
    %cst_16 = arith.constant dense<0.000000e+00> : vector<8x384xf32>
    %52 = tpu.matmul %51, %50, %cst_16 {dimension_numbers = #tpu.dot_dimension_numbers<[1], [0], [0], [1], [0, 0, 1, 1], [], []>} : vector<8x40xf32>, vector<40x384xf32>, vector<8x384xf32> -> vector<8x384xf32>
    %c0_17 = arith.constant 0 : index
    %c0_18 = arith.constant 0 : index
    %53 = vector.load %arg6[%c0_17, %c0_18] : memref<8x1xf32, #tpu.memory_space<vmem>>, vector<8x1xf32>
    %54 = vector.broadcast %53 : vector<8x1xf32> to vector<8x384xf32>
    %55 = arith.addf %52, %54 : vector<8x384xf32>
    %cst_19 = arith.constant 0.000000e+00 : f32
    %56 = vector.broadcast %cst_19 : f32 to vector<8x384xf32>
    %57 = arith.maximumf %55, %56 : vector<8x384xf32>
    %c0_20 = arith.constant 0 : index
    %c0_21 = arith.constant 0 : index
    %c0_22 = arith.constant 0 : index
    %58 = vector.load %arg12[%c0_20, %c0_21, %c0_22] : memref<1x8x384xf32, #tpu.memory_space<vmem>>, vector<1x8x384xf32>
    %59 = vector.shape_cast %58 : vector<1x8x384xf32> to vector<8x384xf32>
    %60 = vector.shape_cast %57 : vector<8x384xf32> to vector<1x8x384xf32>
    tpu.vector_store %arg12[%c0_20, %c0_21, %c0_22], %60 {strides = array<i32>} : memref<1x8x384xf32, #tpu.memory_space<vmem>>, vector<1x8x384xf32>,
    %61 = vector.extract_strided_slice %2 {offsets = [0, 0], sizes = [1, 384], strides = [1, 1]} : vector<6x384xf32> to vector<1x384xf32>
    %62 = vector.extract_strided_slice %2 {offsets = [1, 0], sizes = [1, 384], strides = [1, 1]} : vector<6x384xf32> to vector<1x384xf32>
    %63 = vector.extract_strided_slice %2 {offsets = [2, 0], sizes = [1, 384], strides = [1, 1]} : vector<6x384xf32> to vector<1x384xf32>
    %64 = vector.extract_strided_slice %2 {offsets = [3, 0], sizes = [1, 384], strides = [1, 1]} : vector<6x384xf32> to vector<1x384xf32>
    %65 = vector.extract_strided_slice %39 {offsets = [0, 14], sizes = [4, 384], strides = [1, 1]} : vector<4x480xf32> to vector<4x384xf32>
    %66 = vector.extract_strided_slice %39 {offsets = [0, 30], sizes = [4, 384], strides = [1, 1]} : vector<4x480xf32> to vector<4x384xf32>
    %67 = vector.extract_strided_slice %39 {offsets = [0, 46], sizes = [4, 384], strides = [1, 1]} : vector<4x480xf32> to vector<4x384xf32>
    %68 = vector.extract_strided_slice %39 {offsets = [0, 62], sizes = [4, 384], strides = [1, 1]} : vector<4x480xf32> to vector<4x384xf32>
    %69 = vector.extract_strided_slice %39 {offsets = [0, 78], sizes = [4, 384], strides = [1, 1]} : vector<4x480xf32> to vector<4x384xf32>
    %70 = tpu.concatenate %65, %66, %67, %68, %69 in 0 : vector<4x384xf32>, vector<4x384xf32>, vector<4x384xf32>, vector<4x384xf32>, vector<4x384xf32> -> vector<20x384xf32>
    %71 = vector.broadcast %61 : vector<1x384xf32> to vector<20x384xf32>
    %72 = arith.mulf %70, %71 : vector<20x384xf32>
    %73 = vector.extract_strided_slice %39 {offsets = [0, 15], sizes = [4, 384], strides = [1, 1]} : vector<4x480xf32> to vector<4x384xf32>
    %74 = vector.extract_strided_slice %39 {offsets = [0, 31], sizes = [4, 384], strides = [1, 1]} : vector<4x480xf32> to vector<4x384xf32>
    %75 = vector.extract_strided_slice %39 {offsets = [0, 47], sizes = [4, 384], strides = [1, 1]} : vector<4x480xf32> to vector<4x384xf32>
    %76 = vector.extract_strided_slice %39 {offsets = [0, 63], sizes = [4, 384], strides = [1, 1]} : vector<4x480xf32> to vector<4x384xf32>
    %77 = vector.extract_strided_slice %39 {offsets = [0, 79], sizes = [4, 384], strides = [1, 1]} : vector<4x480xf32> to vector<4x384xf32>
    %78 = tpu.concatenate %73, %74, %75, %76, %77 in 0 : vector<4x384xf32>, vector<4x384xf32>, vector<4x384xf32>, vector<4x384xf32>, vector<4x384xf32> -> vector<20x384xf32>
    %79 = vector.broadcast %62 : vector<1x384xf32> to vector<20x384xf32>
    %80 = arith.mulf %78, %79 : vector<20x384xf32>
    %81 = vector.extract_strided_slice %39 {offsets = [0, 16], sizes = [4, 384], strides = [1, 1]} : vector<4x480xf32> to vector<4x384xf32>
    %82 = vector.extract_strided_slice %39 {offsets = [0, 32], sizes = [4, 384], strides = [1, 1]} : vector<4x480xf32> to vector<4x384xf32>
    %83 = vector.extract_strided_slice %39 {offsets = [0, 48], sizes = [4, 384], strides = [1, 1]} : vector<4x480xf32> to vector<4x384xf32>
    %84 = vector.extract_strided_slice %39 {offsets = [0, 64], sizes = [4, 384], strides = [1, 1]} : vector<4x480xf32> to vector<4x384xf32>
    %85 = vector.extract_strided_slice %39 {offsets = [0, 80], sizes = [4, 384], strides = [1, 1]} : vector<4x480xf32> to vector<4x384xf32>
    %86 = tpu.concatenate %81, %82, %83, %84, %85 in 0 : vector<4x384xf32>, vector<4x384xf32>, vector<4x384xf32>, vector<4x384xf32>, vector<4x384xf32> -> vector<20x384xf32>
    %87 = vector.extract_strided_slice %39 {offsets = [0, 17], sizes = [4, 384], strides = [1, 1]} : vector<4x480xf32> to vector<4x384xf32>
    %88 = vector.extract_strided_slice %39 {offsets = [0, 33], sizes = [4, 384], strides = [1, 1]} : vector<4x480xf32> to vector<4x384xf32>
    %89 = vector.extract_strided_slice %39 {offsets = [0, 49], sizes = [4, 384], strides = [1, 1]} : vector<4x480xf32> to vector<4x384xf32>
    %90 = vector.extract_strided_slice %39 {offsets = [0, 65], sizes = [4, 384], strides = [1, 1]} : vector<4x480xf32> to vector<4x384xf32>
    %91 = vector.extract_strided_slice %39 {offsets = [0, 81], sizes = [4, 384], strides = [1, 1]} : vector<4x480xf32> to vector<4x384xf32>
    %92 = tpu.concatenate %87, %88, %89, %90, %91 in 0 : vector<4x384xf32>, vector<4x384xf32>, vector<4x384xf32>, vector<4x384xf32>, vector<4x384xf32> -> vector<20x384xf32>
    %93 = vector.broadcast %63 : vector<1x384xf32> to vector<20x384xf32>
    %94 = arith.mulf %92, %93 : vector<20x384xf32>
    %95 = vector.extract_strided_slice %39 {offsets = [0, 18], sizes = [4, 384], strides = [1, 1]} : vector<4x480xf32> to vector<4x384xf32>
    %96 = vector.extract_strided_slice %39 {offsets = [0, 34], sizes = [4, 384], strides = [1, 1]} : vector<4x480xf32> to vector<4x384xf32>
    %97 = vector.extract_strided_slice %39 {offsets = [0, 50], sizes = [4, 384], strides = [1, 1]} : vector<4x480xf32> to vector<4x384xf32>
    %98 = vector.extract_strided_slice %39 {offsets = [0, 66], sizes = [4, 384], strides = [1, 1]} : vector<4x480xf32> to vector<4x384xf32>
    %99 = vector.extract_strided_slice %39 {offsets = [0, 82], sizes = [4, 384], strides = [1, 1]} : vector<4x480xf32> to vector<4x384xf32>
    %100 = tpu.concatenate %95, %96, %97, %98, %99 in 0 : vector<4x384xf32>, vector<4x384xf32>, vector<4x384xf32>, vector<4x384xf32>, vector<4x384xf32> -> vector<20x384xf32>
    %101 = vector.broadcast %64 : vector<1x384xf32> to vector<20x384xf32>
    %102 = arith.mulf %100, %101 : vector<20x384xf32>
    %103 = tpu.concatenate %72, %80, %86, %94, %102 in 0 : vector<20x384xf32>, vector<20x384xf32>, vector<20x384xf32>, vector<20x384xf32>, vector<20x384xf32> -> vector<100x384xf32>
    %c0_23 = arith.constant 0 : index
    %c0_24 = arith.constant 0 : index
    %104 = vector.load %arg7[%c0_23, %c0_24] : memref<16x100xf32, #tpu.memory_space<vmem>>, vector<16x100xf32>
    %cst_25 = arith.constant dense<0.000000e+00> : vector<16x384xf32>
    %105 = tpu.matmul %104, %103, %cst_25 {dimension_numbers = #tpu.dot_dimension_numbers<[1], [0], [0], [1], [0, 0, 1, 1], [], []>} : vector<16x100xf32>, vector<100x384xf32>, vector<16x384xf32> -> vector<16x384xf32>
    %c0_26 = arith.constant 0 : index
    %c0_27 = arith.constant 0 : index
    %106 = vector.load %arg8[%c0_26, %c0_27] : memref<16x1xf32, #tpu.memory_space<vmem>>, vector<16x1xf32>
    %107 = vector.broadcast %106 : vector<16x1xf32> to vector<16x384xf32>
    %108 = arith.addf %105, %107 : vector<16x384xf32>
    %cst_28 = arith.constant 0.000000e+00 : f32
    %109 = vector.broadcast %cst_28 : f32 to vector<16x384xf32>
    %110 = arith.maximumf %108, %109 : vector<16x384xf32>
    %cst_29 = arith.constant 0.000000e+00 : f32
    %111 = vector.broadcast %cst_29 : f32 to vector<16x32xf32>
    %112 = tpu.concatenate %111, %110, %111 in 1 : vector<16x32xf32>, vector<16x384xf32>, vector<16x32xf32> -> vector<16x448xf32>
    %113 = vector.extract_strided_slice %2 {offsets = [4, 0], sizes = [1, 384], strides = [1, 1]} : vector<6x384xf32> to vector<1x384xf32>
    %114 = vector.extract_strided_slice %2 {offsets = [5, 0], sizes = [1, 384], strides = [1, 1]} : vector<6x384xf32> to vector<1x384xf32>
    %115 = vector.extract_strided_slice %112 {offsets = [0, 15], sizes = [16, 384], strides = [1, 1]} : vector<16x448xf32> to vector<16x384xf32>
    %116 = vector.extract_strided_slice %112 {offsets = [0, 31], sizes = [16, 384], strides = [1, 1]} : vector<16x448xf32> to vector<16x384xf32>
    %117 = vector.extract_strided_slice %112 {offsets = [0, 47], sizes = [16, 384], strides = [1, 1]} : vector<16x448xf32> to vector<16x384xf32>
    %118 = tpu.concatenate %115, %116, %117 in 0 : vector<16x384xf32>, vector<16x384xf32>, vector<16x384xf32> -> vector<48x384xf32>
    %119 = vector.broadcast %113 : vector<1x384xf32> to vector<48x384xf32>
    %120 = arith.mulf %118, %119 : vector<48x384xf32>
    %121 = vector.extract_strided_slice %112 {offsets = [0, 16], sizes = [16, 384], strides = [1, 1]} : vector<16x448xf32> to vector<16x384xf32>
    %122 = vector.extract_strided_slice %112 {offsets = [0, 32], sizes = [16, 384], strides = [1, 1]} : vector<16x448xf32> to vector<16x384xf32>
    %123 = vector.extract_strided_slice %112 {offsets = [0, 48], sizes = [16, 384], strides = [1, 1]} : vector<16x448xf32> to vector<16x384xf32>
    %124 = tpu.concatenate %121, %122, %123 in 0 : vector<16x384xf32>, vector<16x384xf32>, vector<16x384xf32> -> vector<48x384xf32>
    %125 = vector.extract_strided_slice %112 {offsets = [0, 17], sizes = [16, 384], strides = [1, 1]} : vector<16x448xf32> to vector<16x384xf32>
    %126 = vector.extract_strided_slice %112 {offsets = [0, 33], sizes = [16, 384], strides = [1, 1]} : vector<16x448xf32> to vector<16x384xf32>
    %127 = vector.extract_strided_slice %112 {offsets = [0, 49], sizes = [16, 384], strides = [1, 1]} : vector<16x448xf32> to vector<16x384xf32>
    %128 = tpu.concatenate %125, %126, %127 in 0 : vector<16x384xf32>, vector<16x384xf32>, vector<16x384xf32> -> vector<48x384xf32>
    %129 = vector.broadcast %114 : vector<1x384xf32> to vector<48x384xf32>
    %130 = arith.mulf %128, %129 : vector<48x384xf32>
    %131 = tpu.concatenate %120, %124, %130 in 0 : vector<48x384xf32>, vector<48x384xf32>, vector<48x384xf32> -> vector<144x384xf32>
    %c0_30 = arith.constant 0 : index
    %c0_31 = arith.constant 0 : index
    %132 = vector.load %arg9[%c0_30, %c0_31] : memref<24x144xf32, #tpu.memory_space<vmem>>, vector<24x144xf32>
    %cst_32 = arith.constant dense<0.000000e+00> : vector<24x384xf32>
    %133 = tpu.matmul %132, %131, %cst_32 {dimension_numbers = #tpu.dot_dimension_numbers<[1], [0], [0], [1], [0, 0, 1, 1], [], []>} : vector<24x144xf32>, vector<144x384xf32>, vector<24x384xf32> -> vector<24x384xf32>
    %c0_33 = arith.constant 0 : index
    %c0_34 = arith.constant 0 : index
    %134 = vector.load %arg10[%c0_33, %c0_34] : memref<24x1xf32, #tpu.memory_space<vmem>>, vector<24x1xf32>
    %135 = vector.broadcast %134 : vector<24x1xf32> to vector<24x384xf32>
    %136 = arith.addf %133, %135 : vector<24x384xf32>
    %cst_35 = arith.constant 0.000000e+00 : f32
    %137 = vector.broadcast %cst_35 : f32 to vector<24x17xf32>
    %138 = tpu.concatenate %136, %137 in 1 : vector<24x384xf32>, vector<24x17xf32> -> vector<24x401xf32>
    %139 = vector.extract_strided_slice %138 {offsets = [0, 0], sizes = [24, 384], strides = [1, 1]} : vector<24x401xf32> to vector<24x384xf32>
    %140 = vector.extract_strided_slice %138 {offsets = [0, 1], sizes = [24, 384], strides = [1, 1]} : vector<24x401xf32> to vector<24x384xf32>
    %141 = arith.maximumf %139, %140 : vector<24x384xf32>
    %142 = vector.extract_strided_slice %138 {offsets = [0, 16], sizes = [24, 384], strides = [1, 1]} : vector<24x401xf32> to vector<24x384xf32>
    %143 = vector.extract_strided_slice %138 {offsets = [0, 17], sizes = [24, 384], strides = [1, 1]} : vector<24x401xf32> to vector<24x384xf32>
    %144 = arith.maximumf %142, %143 : vector<24x384xf32>
    %145 = arith.maximumf %141, %144 : vector<24x384xf32>
    %cst_36 = arith.constant 0.000000e+00 : f32
    %146 = vector.broadcast %cst_36 : f32 to vector<24x384xf32>
    %147 = arith.maximumf %145, %146 : vector<24x384xf32>
    %c0_37 = arith.constant 0 : index
    %c0_38 = arith.constant 0 : index
    %c0_39 = arith.constant 0 : index
    %148 = vector.load %arg13[%c0_37, %c0_38, %c0_39] : memref<1x24x384xf32, #tpu.memory_space<vmem>>, vector<1x24x384xf32>
    %149 = vector.shape_cast %148 : vector<1x24x384xf32> to vector<24x384xf32>
    %150 = vector.shape_cast %147 : vector<24x384xf32> to vector<1x24x384xf32>
    tpu.vector_store %arg13[%c0_37, %c0_38, %c0_39], %150 {strides = array<i32>} : memref<1x24x384xf32, #tpu.memory_space<vmem>>, vector<1x24x384xf32>,
    return
  }
  func.func @transform_0(%arg0: i32) -> (i32, i32, i32) {
    %c0_i32 = arith.constant 0 : i32
    %c0_i32_0 = arith.constant 0 : i32
    %c0_i32_1 = arith.constant 0 : i32
    return %arg0, %c0_i32, %c0_i32_0 : i32, i32, i32
  }
  func.func @transform_1(%arg0: i32) -> (i32, i32) {
    %c0_i32 = arith.constant 0 : i32
    %c0_i32_0 = arith.constant 0 : i32
    %c0_i32_1 = arith.constant 0 : i32
    return %c0_i32, %c0_i32_0 : i32, i32
  }
  func.func @transform_2(%arg0: i32) -> (i32, i32) {
    %c0_i32 = arith.constant 0 : i32
    %c0_i32_0 = arith.constant 0 : i32
    %c0_i32_1 = arith.constant 0 : i32
    return %c0_i32, %c0_i32_0 : i32, i32
  }
  func.func @transform_3(%arg0: i32) -> (i32, i32) {
    %c0_i32 = arith.constant 0 : i32
    %c0_i32_0 = arith.constant 0 : i32
    %c0_i32_1 = arith.constant 0 : i32
    return %c0_i32, %c0_i32_0 : i32, i32
  }
  func.func @transform_4(%arg0: i32) -> (i32, i32) {
    %c0_i32 = arith.constant 0 : i32
    %c0_i32_0 = arith.constant 0 : i32
    %c0_i32_1 = arith.constant 0 : i32
    return %c0_i32, %c0_i32_0 : i32, i32
  }
  func.func @transform_5(%arg0: i32) -> (i32, i32) {
    %c0_i32 = arith.constant 0 : i32
    %c0_i32_0 = arith.constant 0 : i32
    %c0_i32_1 = arith.constant 0 : i32
    return %c0_i32, %c0_i32_0 : i32, i32
  }
  func.func @transform_6(%arg0: i32) -> (i32, i32) {
    %c0_i32 = arith.constant 0 : i32
    %c0_i32_0 = arith.constant 0 : i32
    %c0_i32_1 = arith.constant 0 : i32
    return %c0_i32, %c0_i32_0 : i32, i32
  }
  func.func @transform_7(%arg0: i32) -> (i32, i32) {
    %c0_i32 = arith.constant 0 : i32
    %c0_i32_0 = arith.constant 0 : i32
    %c0_i32_1 = arith.constant 0 : i32
    return %c0_i32, %c0_i32_0 : i32, i32
  }
  func.func @transform_8(%arg0: i32) -> (i32, i32) {
    %c0_i32 = arith.constant 0 : i32
    %c0_i32_0 = arith.constant 0 : i32
    %c0_i32_1 = arith.constant 0 : i32
    return %c0_i32, %c0_i32_0 : i32, i32
  }
  func.func @transform_9(%arg0: i32) -> (i32, i32) {
    %c0_i32 = arith.constant 0 : i32
    %c0_i32_0 = arith.constant 0 : i32
    %c0_i32_1 = arith.constant 0 : i32
    return %c0_i32, %c0_i32_0 : i32, i32
  }
  func.func @transform_10(%arg0: i32) -> (i32, i32, i32) {
    %c0_i32 = arith.constant 0 : i32
    %c0_i32_0 = arith.constant 0 : i32
    %c0_i32_1 = arith.constant 0 : i32
    return %arg0, %c0_i32, %c0_i32_0 : i32, i32, i32
  }
  func.func @transform_11(%arg0: i32) -> (i32, i32, i32) {
    %c0_i32 = arith.constant 0 : i32
    %c0_i32_0 = arith.constant 0 : i32
    %c0_i32_1 = arith.constant 0 : i32
    return %arg0, %c0_i32, %c0_i32_0 : i32, i32, i32
  }
  func.func @transform_12(%arg0: i32) -> (i32, i32, i32) {
    %c0_i32 = arith.constant 0 : i32
    %c0_i32_0 = arith.constant 0 : i32
    %c0_i32_1 = arith.constant 0 : i32
    return %arg0, %c0_i32, %c0_i32_0 : i32, i32, i32
  }
}

</mosaic_0001>

<llo_original>
// kernel: cnn_forward.1
$region0: #{cnn_forward.1}
  #allocation0 [shape = 'u32[]', space=smem, size = 0x4, offset = 0x4, fixed_abs, tag = 'smem constant byte address 0x4 - core index']
  #allocation1 [shape = 'u32[144,128]{1,0:T(1,128)}', space=vmem, size = 0x12000, scoped, tag = 'internal scratch']
  %s0 = inlined_call_operand.vmem [shape: f32[2,4,384], index: 0, kind: input, shape index: {}]
  %s1 = inlined_call_operand.vmem [shape: f32[6,384], index: 1, kind: input, shape index: {}]
  %s2 = inlined_call_operand.vmem [shape: f32[8,80], index: 2, kind: input, shape index: {}]
  %s3 = inlined_call_operand.vmem [shape: f32[8,1], index: 3, kind: input, shape index: {}]
  %s4 = inlined_call_operand.vmem [shape: f32[8,40], index: 4, kind: input, shape index: {}]
  %s5 = inlined_call_operand.vmem [shape: f32[8,1], index: 5, kind: input, shape index: {}]
  %s6 = inlined_call_operand.vmem [shape: f32[16,100], index: 6, kind: input, shape index: {}]
  %s7 = inlined_call_operand.vmem [shape: f32[16,1], index: 7, kind: input, shape index: {}]
  %s8 = inlined_call_operand.vmem [shape: f32[24,144], index: 8, kind: input, shape index: {}]
  %s9 = inlined_call_operand.vmem [shape: f32[24,1], index: 9, kind: input, shape index: {}]
  %s10 = inlined_call_operand.vmem [shape: f32[2,8,128], index: 10, kind: output, shape index: {0}]
  %s11 = inlined_call_operand.vmem [shape: f32[2,8,384], index: 11, kind: output, shape index: {1}]
  %s12 = inlined_call_operand.vmem [shape: f32[2,24,384], index: 12, kind: output, shape index: {2}]
  %13 = xla_tuple %s10, %s11, %s12
  %s14 = sld [smem:[#allocation0]]
  $region89: #{cnn_forward.1} parent=0
    _
  %s16 = ssub.s32 1, %s14
  %s17 = scalar_select 0, %s16, %s14
  loop: start=0, step=1, limit=4
  $region2: #{cnn_forward.1} parent=0 // loop_pre_header
    _
  $region3: #{cnn_forward.1} parent=0 // loop_header
    %s19 = sphi 0, %s23
    %p20 = scmp.ge.s32.totalorder %s19, 4
    %s29 = sphi 0, %s31
    %s32 = sphi 0, %s29
    %s33 = sphi 0, %s32
    %s49 = sphi 0, %s33
    %s53 = sphi 0, %s53
    %s55 = sphi 0, %s53
    %s56 = sphi 0, %s55
    %s70 = sphi 0, %s56
    %s74 = sphi 0, %s74
    %s76 = sphi 0, %s74
    %s77 = sphi 0, %s76
    %s91 = sphi 0, %s77
    %s95 = sphi 0, %s95
    %s97 = sphi 0, %s95
    %s98 = sphi 0, %s97
    %s112 = sphi 0, %s98
    %s116 = sphi 0, %s116
    %s118 = sphi 0, %s116
    %s119 = sphi 0, %s118
    %s133 = sphi 0, %s119
    %s137 = sphi 0, %s137
    %s139 = sphi 0, %s137
    %s140 = sphi 0, %s139
    %s154 = sphi 0, %s140
    %s158 = sphi 0, %s158
    %s160 = sphi 0, %s158
    %s161 = sphi 0, %s160
    %s175 = sphi 0, %s161
    %s179 = sphi 0, %s179
    %s181 = sphi 0, %s179
    %s182 = sphi 0, %s181
    %s196 = sphi 0, %s182
    %s200 = sphi 0, %s200
    %s202 = sphi 0, %s200
    %s203 = sphi 0, %s202
    %s217 = sphi 0, %s203
    %s221 = sphi 0, %s221
    %s223 = sphi 0, %s221
    %s224 = sphi 0, %s223
    %s238 = sphi 0, %s224
    %s244 = sphi 0, %s246
    %s247 = sphi 0, %s244
    %s248 = sphi 0, %s247
    %s264 = sphi 0, %s248
    %s270 = sphi 0, %s272
    %s273 = sphi 0, %s270
    %s274 = sphi 0, %s273
    %s290 = sphi 0, %s274
    %s296 = sphi 0, %s298
    %s299 = sphi 0, %s296
    %s300 = sphi 0, %s299
    %s316 = sphi 0, %s300
  $region4: #{cnn_forward.1} parent=0 // loop_header_branch
    %22 = sbr.rel (%p20) target = $region8
  $region5: #{cnn_forward.1} parent=0 // loop_body
    %s24 = ssub.s32 %s19, 1
    %s25 = ssub.s32 %s19, 2
    %s26 = sadd.s32 %s19, 1
    %s27 = ssub.s32 %s19, %s26
    %p28 = scmp.eq.s32.totalorder %s27, 0
    %s30 = sadd.s32 %s29, 1
    %s31 = scalar_select %p28, %s29, %s30
    %p34 = pneg %p28
    %p35 = scmp.eq.s32.totalorder %s19, 1
    %p36 = por %p34, %p35
    %p37 = scmp.ne.s32.totalorder %s29, %s32
    %p38 = scmp.eq.s32.totalorder %s19, 0
    %p39 = por %p37, %p38
    %p40 = scmp.ne.s32.totalorder %s29, %s32
    %p41 = scmp.eq.s32.totalorder %s24, 1
    %p42 = por %p40, %p41
    %p43 = scmp.ne.s32.totalorder %s32, %s33
    %p44 = scmp.eq.s32.totalorder %s24, 0
    %p45 = por %p43, %p44
    %p46 = scmp.ne.s32.totalorder %s32, %s33
    %p47 = scmp.eq.s32.totalorder %s25, 1
    %p48 = por %p46, %p47
    %p50 = scmp.ne.s32.totalorder %s33, %s49
    %p51 = scmp.eq.s32.totalorder %s25, 0
    %p52 = por %p50, %p51
    %s54 = sadd.s32 %s53, 1
    %p57 = scmp.eq.s32.totalorder %s19, 1
    %p58 = scmp.ne.s32.totalorder %s53, %s55
    %p59 = scmp.eq.s32.totalorder %s19, 0
    %p60 = por %p58, %p59
    %p61 = scmp.ne.s32.totalorder %s53, %s55
    %p62 = scmp.eq.s32.totalorder %s24, 1
    %p63 = por %p61, %p62
    %p64 = scmp.ne.s32.totalorder %s55, %s56
    %p65 = scmp.eq.s32.totalorder %s24, 0
    %p66 = por %p64, %p65
    %p67 = scmp.ne.s32.totalorder %s55, %s56
    %p68 = scmp.eq.s32.totalorder %s25, 1
    %p69 = por %p67, %p68
    %p71 = scmp.ne.s32.totalorder %s56, %s70
    %p72 = scmp.eq.s32.totalorder %s25, 0
    %p73 = por %p71, %p72
    %s75 = sadd.s32 %s74, 1
    %p78 = scmp.eq.s32.totalorder %s19, 1
    %p79 = scmp.ne.s32.totalorder %s74, %s76
    %p80 = scmp.eq.s32.totalorder %s19, 0
    %p81 = por %p79, %p80
    %p82 = scmp.ne.s32.totalorder %s74, %s76
    %p83 = scmp.eq.s32.totalorder %s24, 1
    %p84 = por %p82, %p83
    %p85 = scmp.ne.s32.totalorder %s76, %s77
    %p86 = scmp.eq.s32.totalorder %s24, 0
    %p87 = por %p85, %p86
    %p88 = scmp.ne.s32.totalorder %s76, %s77
    %p89 = scmp.eq.s32.totalorder %s25, 1
    %p90 = por %p88, %p89
    %p92 = scmp.ne.s32.totalorder %s77, %s91
    %p93 = scmp.eq.s32.totalorder %s25, 0
    %p94 = por %p92, %p93
    %s96 = sadd.s32 %s95, 1
    %p99 = scmp.eq.s32.totalorder %s19, 1
    %p100 = scmp.ne.s32.totalorder %s95, %s97
    %p101 = scmp.eq.s32.totalorder %s19, 0
    %p102 = por %p100, %p101
    %p103 = scmp.ne.s32.totalorder %s95, %s97
    %p104 = scmp.eq.s32.totalorder %s24, 1
    %p105 = por %p103, %p104
    %p106 = scmp.ne.s32.totalorder %s97, %s98
    %p107 = scmp.eq.s32.totalorder %s24, 0
    %p108 = por %p106, %p107
    %p109 = scmp.ne.s32.totalorder %s97, %s98
    %p110 = scmp.eq.s32.totalorder %s25, 1
    %p111 = por %p109, %p110
    %p113 = scmp.ne.s32.totalorder %s98, %s112
    %p114 = scmp.eq.s32.totalorder %s25, 0
    %p115 = por %p113, %p114
    %s117 = sadd.s32 %s116, 1
    %p120 = scmp.eq.s32.totalorder %s19, 1
    %p121 = scmp.ne.s32.totalorder %s116, %s118
    %p122 = scmp.eq.s32.totalorder %s19, 0
    %p123 = por %p121, %p122
    %p124 = scmp.ne.s32.totalorder %s116, %s118
    %p125 = scmp.eq.s32.totalorder %s24, 1
    %p126 = por %p124, %p125
    %p127 = scmp.ne.s32.totalorder %s118, %s119
    %p128 = scmp.eq.s32.totalorder %s24, 0
    %p129 = por %p127, %p128
    %p130 = scmp.ne.s32.totalorder %s118, %s119
    %p131 = scmp.eq.s32.totalorder %s25, 1
    %p132 = por %p130, %p131
    %p134 = scmp.ne.s32.totalorder %s119, %s133
    %p135 = scmp.eq.s32.totalorder %s25, 0
    %p136 = por %p134, %p135
    %s138 = sadd.s32 %s137, 1
    %p141 = scmp.eq.s32.totalorder %s19, 1
    %p142 = scmp.ne.s32.totalorder %s137, %s139
    %p143 = scmp.eq.s32.totalorder %s19, 0
    %p144 = por %p142, %p143
    %p145 = scmp.ne.s32.totalorder %s137, %s139
    %p146 = scmp.eq.s32.totalorder %s24, 1
    %p147 = por %p145, %p146
    %p148 = scmp.ne.s32.totalorder %s139, %s140
    %p149 = scmp.eq.s32.totalorder %s24, 0
    %p150 = por %p148, %p149
    %p151 = scmp.ne.s32.totalorder %s139, %s140
    %p152 = scmp.eq.s32.totalorder %s25, 1
    %p153 = por %p151, %p152
    %p155 = scmp.ne.s32.totalorder %s140, %s154
    %p156 = scmp.eq.s32.totalorder %s25, 0
    %p157 = por %p155, %p156
    %s159 = sadd.s32 %s158, 1
    %p162 = scmp.eq.s32.totalorder %s19, 1
    %p163 = scmp.ne.s32.totalorder %s158, %s160
    %p164 = scmp.eq.s32.totalorder %s19, 0
    %p165 = por %p163, %p164
    %p166 = scmp.ne.s32.totalorder %s158, %s160
    %p167 = scmp.eq.s32.totalorder %s24, 1
    %p168 = por %p166, %p167
    %p169 = scmp.ne.s32.totalorder %s160, %s161
    %p170 = scmp.eq.s32.totalorder %s24, 0
    %p171 = por %p169, %p170
    %p172 = scmp.ne.s32.totalorder %s160, %s161
    %p173 = scmp.eq.s32.totalorder %s25, 1
    %p174 = por %p172, %p173
    %p176 = scmp.ne.s32.totalorder %s161, %s175
    %p177 = scmp.eq.s32.totalorder %s25, 0
    %p178 = por %p176, %p177
    %s180 = sadd.s32 %s179, 1
    %p183 = scmp.eq.s32.totalorder %s19, 1
    %p184 = scmp.ne.s32.totalorder %s179, %s181
    %p185 = scmp.eq.s32.totalorder %s19, 0
    %p186 = por %p184, %p185
    %p187 = scmp.ne.s32.totalorder %s179, %s181
    %p188 = scmp.eq.s32.totalorder %s24, 1
    %p189 = por %p187, %p188
    %p190 = scmp.ne.s32.totalorder %s181, %s182
    %p191 = scmp.eq.s32.totalorder %s24, 0
    %p192 = por %p190, %p191
    %p193 = scmp.ne.s32.totalorder %s181, %s182
    %p194 = scmp.eq.s32.totalorder %s25, 1
    %p195 = por %p193, %p194
    %p197 = scmp.ne.s32.totalorder %s182, %s196
    %p198 = scmp.eq.s32.totalorder %s25, 0
    %p199 = por %p197, %p198
    %s201 = sadd.s32 %s200, 1
    %p204 = scmp.eq.s32.totalorder %s19, 1
    %p205 = scmp.ne.s32.totalorder %s200, %s202
    %p206 = scmp.eq.s32.totalorder %s19, 0
    %p207 = por %p205, %p206
    %p208 = scmp.ne.s32.totalorder %s200, %s202
    %p209 = scmp.eq.s32.totalorder %s24, 1
    %p210 = por %p208, %p209
    %p211 = scmp.ne.s32.totalorder %s202, %s203
    %p212 = scmp.eq.s32.totalorder %s24, 0
    %p213 = por %p211, %p212
    %p214 = scmp.ne.s32.totalorder %s202, %s203
    %p215 = scmp.eq.s32.totalorder %s25, 1
    %p216 = por %p214, %p215
    %p218 = scmp.ne.s32.totalorder %s203, %s217
    %p219 = scmp.eq.s32.totalorder %s25, 0
    %p220 = por %p218, %p219
    %s222 = sadd.s32 %s221, 1
    %p225 = scmp.eq.s32.totalorder %s19, 1
    %p226 = scmp.ne.s32.totalorder %s221, %s223
    %p227 = scmp.eq.s32.totalorder %s19, 0
    %p228 = por %p226, %p227
    %p229 = scmp.ne.s32.totalorder %s221, %s223
    %p230 = scmp.eq.s32.totalorder %s24, 1
    %p231 = por %p229, %p230
    %p232 = scmp.ne.s32.totalorder %s223, %s224
    %p233 = scmp.eq.s32.totalorder %s24, 0
    %p234 = por %p232, %p233
    %p235 = scmp.ne.s32.totalorder %s223, %s224
    %p236 = scmp.eq.s32.totalorder %s25, 1
    %p237 = por %p235, %p236
    %p239 = scmp.ne.s32.totalorder %s224, %s238
    %p240 = scmp.eq.s32.totalorder %s25, 0
    %p241 = por %p239, %p240
    %s242 = ssub.s32 %s19, %s26
    %p243 = scmp.eq.s32.totalorder %s242, 0
    %s245 = sadd.s32 %s244, 1
    %s246 = scalar_select %p243, %s244, %s245
    %p249 = pneg %p243
    %p250 = scmp.eq.s32.totalorder %s19, 1
    %p251 = por %p249, %p250
    %p252 = scmp.ne.s32.totalorder %s244, %s247
    %p253 = scmp.eq.s32.totalorder %s19, 0
    %p254 = por %p252, %p253
    %p255 = scmp.ne.s32.totalorder %s244, %s247
    %p256 = scmp.eq.s32.totalorder %s24, 1
    %p257 = por %p255, %p256
    %p258 = scmp.ne.s32.totalorder %s247, %s248
    %p259 = scmp.eq.s32.totalorder %s24, 0
    %p260 = por %p258, %p259
    %p261 = scmp.ne.s32.totalorder %s247, %s248
    %p262 = scmp.eq.s32.totalorder %s25, 1
    %p263 = por %p261, %p262
    %p265 = scmp.ne.s32.totalorder %s248, %s264
    %p266 = scmp.eq.s32.totalorder %s25, 0
    %p267 = por %p265, %p266
    %s268 = ssub.s32 %s19, %s26
    %p269 = scmp.eq.s32.totalorder %s268, 0
    %s271 = sadd.s32 %s270, 1
    %s272 = scalar_select %p269, %s270, %s271
    %p275 = pneg %p269
    %p276 = scmp.eq.s32.totalorder %s19, 1
    %p277 = por %p275, %p276
    %p278 = scmp.ne.s32.totalorder %s270, %s273
    %p279 = scmp.eq.s32.totalorder %s19, 0
    %p280 = por %p278, %p279
    %p281 = scmp.ne.s32.totalorder %s270, %s273
    %p282 = scmp.eq.s32.totalorder %s24, 1
    %p283 = por %p281, %p282
    %p284 = scmp.ne.s32.totalorder %s273, %s274
    %p285 = scmp.eq.s32.totalorder %s24, 0
    %p286 = por %p284, %p285
    %p287 = scmp.ne.s32.totalorder %s273, %s274
    %p288 = scmp.eq.s32.totalorder %s25, 1
    %p289 = por %p287, %p288
    %p291 = scmp.ne.s32.totalorder %s274, %s290
    %p292 = scmp.eq.s32.totalorder %s25, 0
    %p293 = por %p291, %p292
    %s294 = ssub.s32 %s19, %s26
    %p295 = scmp.eq.s32.totalorder %s294, 0
    %s297 = sadd.s32 %s296, 1
    %s298 = scalar_select %p295, %s296, %s297
    %p301 = pneg %p295
    %p302 = scmp.eq.s32.totalorder %s19, 1
    %p303 = por %p301, %p302
    %p304 = scmp.ne.s32.totalorder %s296, %s299
    %p305 = scmp.eq.s32.totalorder %s19, 0
    %p306 = por %p304, %p305
    %p307 = scmp.ne.s32.totalorder %s296, %s299
    %p308 = scmp.eq.s32.totalorder %s24, 1
    %p309 = por %p307, %p308
    %p310 = scmp.ne.s32.totalorder %s299, %s300
    %p311 = scmp.eq.s32.totalorder %s24, 0
    %p312 = por %p310, %p311
    %p313 = scmp.ne.s32.totalorder %s299, %s300
    %p314 = scmp.eq.s32.totalorder %s25, 1
    %p315 = por %p313, %p314
    %p317 = scmp.ne.s32.totalorder %s300, %s316
    %p318 = scmp.eq.s32.totalorder %s25, 0
    %p319 = por %p317, %p318
    %p320 = scmp.le.s32.totalorder 1, %s19
    %p321 = scmp.lt.s32.totalorder %s19, 3
    %p322 = pnand %p320, %p321
    %p323 = pneg %p322
    // Predicated region
    $region9: #{cnn_forward.1} parent=5 // pred_check
      _
    $region10: #{cnn_forward.1} parent=5 // pred_check_branch
      %325 = sbr.rel (%p322) target = $region12
    $region11: #{cnn_forward.1} parent=5 // pred_region
      %s326 = ssub.s32 %s19, 1
      // Predicated region
      $region13: #{cnn_forward.1} parent=11 // pred_check
        %p327 = pneg %p66
      $region14: #{cnn_forward.1} parent=11 // pred_check_branch
        %329 = sbr.rel (%p327) target = $region16
      $region15: #{cnn_forward.1} parent=11 // pred_region
        _
      $region16: #{cnn_forward.1} parent=11 // pred_fallthru
        _
      // Predicated region
      $region17: #{cnn_forward.1} parent=11 // pred_check
        %p330 = pneg %p87
      $region18: #{cnn_forward.1} parent=11 // pred_check_branch
        %332 = sbr.rel (%p330) target = $region20
      $region19: #{cnn_forward.1} parent=11 // pred_region
        _
      $region20: #{cnn_forward.1} parent=11 // pred_fallthru
        _
      // Predicated region
      $region21: #{cnn_forward.1} parent=11 // pred_check
        %p333 = pneg %p108
      $region22: #{cnn_forward.1} parent=11 // pred_check_branch
        %335 = sbr.rel (%p333) target = $region24
      $region23: #{cnn_forward.1} parent=11 // pred_region
        _
      $region24: #{cnn_forward.1} parent=11 // pred_fallthru
        _
      // Predicated region
      $region25: #{cnn_forward.1} parent=11 // pred_check
        %p336 = pneg %p129
      $region26: #{cnn_forward.1} parent=11 // pred_check_branch
        %338 = sbr.rel (%p336) target = $region28
      $region27: #{cnn_forward.1} parent=11 // pred_region
        _
      $region28: #{cnn_forward.1} parent=11 // pred_fallthru
        _
      // Predicated region
      $region29: #{cnn_forward.1} parent=11 // pred_check
        %p339 = pneg %p150
      $region30: #{cnn_forward.1} parent=11 // pred_check_branch
        %341 = sbr.rel (%p339) target = $region32
      $region31: #{cnn_forward.1} parent=11 // pred_region
        _
      $region32: #{cnn_forward.1} parent=11 // pred_fallthru
        _
      // Predicated region
      $region33: #{cnn_forward.1} parent=11 // pred_check
        %p342 = pneg %p171
      $region34: #{cnn_forward.1} parent=11 // pred_check_branch
        %344 = sbr.rel (%p342) target = $region36
      $region35: #{cnn_forward.1} parent=11 // pred_region
        _
      $region36: #{cnn_forward.1} parent=11 // pred_fallthru
        _
      // Predicated region
      $region37: #{cnn_forward.1} parent=11 // pred_check
        %p345 = pneg %p192
      $region38: #{cnn_forward.1} parent=11 // pred_check_branch
        %347 = sbr.rel (%p345) target = $region40
      $region39: #{cnn_forward.1} parent=11 // pred_region
        _
      $region40: #{cnn_forward.1} parent=11 // pred_fallthru
        _
      // Predicated region
      $region41: #{cnn_forward.1} parent=11 // pred_check
        %p348 = pneg %p213
      $region42: #{cnn_forward.1} parent=11 // pred_check_branch
        %350 = sbr.rel (%p348) target = $region44
      $region43: #{cnn_forward.1} parent=11 // pred_region
        _
      $region44: #{cnn_forward.1} parent=11 // pred_fallthru
        _
      // Predicated region
      $region45: #{cnn_forward.1} parent=11 // pred_check
        %p351 = pneg %p234
      $region46: #{cnn_forward.1} parent=11 // pred_check_branch
        %353 = sbr.rel (%p351) target = $region48
      $region47: #{cnn_forward.1} parent=11 // pred_region
        _
      $region48: #{cnn_forward.1} parent=11 // pred_fallthru
        _
    $region12: #{cnn_forward.1} parent=5 // pred_fallthru
      _
    %p354 = scmp.lt.s32.totalorder %s19, 2
    // Predicated region
    $region49: #{cnn_forward.1} parent=5 // pred_check
      %p355 = pneg %p354
    $region50: #{cnn_forward.1} parent=5 // pred_check_branch
      %357 = sbr.rel (%p355) target = $region52
    $region51: #{cnn_forward.1} parent=5 // pred_region
      // Predicated region
      $region53: #{cnn_forward.1} parent=51 // pred_check
        %p358 = pneg %p39
      $region54: #{cnn_forward.1} parent=51 // pred_check_branch
        %360 = sbr.rel (%p358) target = $region56
      $region55: #{cnn_forward.1} parent=51 // pred_region
        %p361 = scmp.lt.s32.totalorder %s19, 1
        %s362 = scalar_select %p361, %s19, 1
        %s363 = smul.addr %s362, 3
        %s364 = smul.addr %s363, 4
        %s365 = scalar_lea.vmem %s0, %s364
      $region56: #{cnn_forward.1} parent=51 // pred_fallthru
        _
    $region52: #{cnn_forward.1} parent=5 // pred_fallthru
      _
    %p366 = scmp.le.s32.totalorder 1, %s19
    %p367 = scmp.lt.s32.totalorder %s19, 3
    %p368 = pnand %p366, %p367
    %p369 = pneg %p368
    // Predicated region
    $region57: #{cnn_forward.1} parent=5 // pred_check
      _
    $region58: #{cnn_forward.1} parent=5 // pred_check_branch
      %371 = sbr.rel (%p368) target = $region60
    $region59: #{cnn_forward.1} parent=5 // pred_region
      %s372 = ssub.s32 %s19, 1
      %p373 = scmp.lt.s32.totalorder %s24, 1
      %s374 = scalar_select %p373, %s24, 1
      %s375 = smul.addr %s374, 3
      %s376 = smul.addr %s375, 4
      %s377 = scalar_lea.vmem %s0, %s376
      %p378 = pneg %p45
      %p379 = pneg %p42
      %p380 = pneg %p66
      %p381 = pneg %p63
      %p382 = pneg %p87
      %p383 = pneg %p84
      %p384 = pneg %p108
      %p385 = pneg %p105
      %p386 = pneg %p129
      %p387 = pneg %p126
      %p388 = pneg %p150
      %p389 = pneg %p147
      %p390 = pneg %p171
      %p391 = pneg %p168
      %p392 = pneg %p192
      %p393 = pneg %p189
      %p394 = pneg %p213
      %p395 = pneg %p210
      %p396 = pneg %p234
      %p397 = pneg %p231
      %p398 = pneg %p260
      %p399 = pneg %p257
      %p400 = scmp.lt.s32.totalorder %s24, 1
      %s401 = scalar_select %p400, %s24, 1
      %s402 = smul.addr %s401, 8
      %s403 = scalar_lea.vmem %s10, %s402
      %p404 = pneg %p286
      %p405 = pneg %p283
      %p406 = scmp.lt.s32.totalorder %s24, 1
      %s407 = scalar_select %p406, %s24, 1
      %s408 = smul.addr %s407, 3
      %s409 = smul.addr %s408, 8
      %s410 = scalar_lea.vmem %s11, %s409
      %p411 = pneg %p312
      %p412 = pneg %p309
      %p413 = scmp.lt.s32.totalorder %s24, 1
      %s414 = scalar_select %p413, %s24, 1
      %s415 = smul.addr %s414, 9
      %s416 = smul.addr %s415, 8
      %s417 = scalar_lea.vmem %s12, %s416
      %p418 = scmp.lt.s32.totalorder %s24, 1
      %s419 = scalar_select %p418, %s24, 1
      %s420 = smul.addr %s419, 3
      %s421 = smul.addr %s420, 4
      %s422 = scalar_lea.vmem %s0, %s421
      %p423 = scmp.lt.s32.totalorder %s24, 1
      %s424 = scalar_select %p423, %s24, 1
      %s425 = smul.addr %s424, 8
      %s426 = scalar_lea.vmem %s10, %s425
      %p427 = scmp.lt.s32.totalorder %s24, 1
      %s428 = scalar_select %p427, %s24, 1
      %s429 = smul.addr %s428, 3
      %s430 = smul.addr %s429, 8
      %s431 = scalar_lea.vmem %s11, %s430
      %p432 = scmp.lt.s32.totalorder %s24, 1
      %s433 = scalar_select %p432, %s24, 1
      %s434 = smul.addr %s433, 9
      %s435 = smul.addr %s434, 8
      %s436 = scalar_lea.vmem %s12, %s435
      %v437 = vld [vmem:[%s422] sm:$0xff]
      %v438 = vld [vmem:[%s422 + $0x8] sm:$0xf]
      %v439 = vld [vmem:[%s1] sm:$0x3f]
      %v440 = vld [vmem:[%s1 + $0x8] sm:$0x3f]
      %v441 = vld [vmem:[%s1 + $0x10] sm:$0x3f]
      %v443 = vcombine.low %v437, %v437
      %444 = vrot.lane.b32.xlu0 %v443, 112
      %v445 = vpop.permute.xlu0 %444
      %447 = vrot.lane.b32.xlu0 %v437, 96
      %v448 = vpop.permute.xlu0 %447
      %450 = vrot.lane.b32.xlu0 %v443, 80
      %v451 = vpop.permute.xlu0 %450
      %v453 = vcombine.high %v437, %v437
      %454 = vrot.lane.b32.xlu0 %v437, 64
      %v455 = vpop.permute.xlu0 %454
      %456 = vrot.lane.b32.xlu0 %v453, 64
      %v457 = vpop.permute.xlu0 %456
      %vm458 = vcmask 523264
      %v459 = vsel %vm458, %v455, %v457
      %461 = vrot.lane.b32.xlu0 %v443, 48
      %v462 = vpop.permute.xlu0 %461
      %463 = vrot.lane.b32.xlu0 %v437, 48
      %v464 = vpop.permute.xlu0 %463
      %vm465 = vcmask 392192
      %v466 = vsel %vm465, %v462, %v464
      %468 = vrot.lane.b32.xlu0 %v437, 32
      %v469 = vpop.permute.xlu0 %468
      %470 = vrot.lane.b32.xlu0 %v453, 32
      %v471 = vpop.permute.xlu0 %470
      %vm472 = vcmask 261120
      %v473 = vsel %vm472, %v469, %v471
      %475 = vrot.lane.b32.xlu0 %v443, 16
      %v476 = vpop.permute.xlu0 %475
      %477 = vrot.lane.b32.xlu0 %v437, 16
      %v478 = vpop.permute.xlu0 %477
      %vm479 = vcmask 130048
      %v480 = vsel %vm479, %v476, %v478
      %483 = vrot.lane.b32.xlu0 %v437, 112
      %v484 = vpop.permute.xlu0 %483
      %486 = vrot.lane.b32.xlu0 %v453, 96
      %v487 = vpop.permute.xlu0 %486
      %489 = vrot.lane.b32.xlu0 %v437, 80
      %v490 = vpop.permute.xlu0 %489
      %493 = vrot.lane.b32.xlu0 %v438, 64
      %v494 = vpop.permute.xlu0 %493
      %v495 = vsel %vm458, %v457, %v494
      %v497 = vcombine.low %v438, %v438
      %498 = vrot.lane.b32.xlu0 %v497, 48
      %v499 = vpop.permute.xlu0 %498
      %v500 = vsel %vm465, %v464, %v499
      %502 = vrot.lane.b32.xlu0 %v438, 32
      %v503 = vpop.permute.xlu0 %502
      %v504 = vsel %vm472, %v471, %v503
      %506 = vrot.lane.b32.xlu0 %v497, 16
      %v507 = vpop.permute.xlu0 %506
      %v508 = vsel %vm479, %v478, %v507
      %vm510 = vcmask 1043456
      %v511 = vsel %vm510, %v437, %v445
      %v512 = vsel %vm510, %v448, %v451
      %v513 = vsel %vm510, %v459, %v466
      %v514 = vsel %vm510, %v473, %v480
      %v515 = vsel %vm510, %v453, %v484
      %v516 = vsel %vm510, %v487, %v490
      %v517 = vsel %vm510, %v495, %v500
      %v518 = vsel %vm510, %v504, %v508
      %519 = vrot.lane.b32.xlu0 %v497, 112
      %v520 = vpop.permute.xlu0 %519
      %522 = vrot.lane.b32.xlu0 %v438, 96
      %v523 = vpop.permute.xlu0 %522
      %525 = vrot.lane.b32.xlu0 %v497, 80
      %v526 = vpop.permute.xlu0 %525
      %v528 = vsel %vm510, %v438, %v520
      %v529 = vsel %vm510, %v523, %v526
      %v530 = vld [vmem:[%s2] sm:$0xff]
      %v531 = vld [vmem:[%s3] sm:$0xff]
      %533 = vset.pattern.permute.xlu0 0
      %534 = vperm.xlu0 %533, %v531
      %v535 = vpop.permute.xlu0 %534
      %vm537 = vcmask 654336
      %v539 = vsel %vm537, %v530, 0
      %541 = vmatprep.subr.mxu0 0.0
      %542 = vmatpush1.msra.mxu0 0.0
      %543 = vmatprep.subr.mxu0 0.0
      %544 = vmatpush1.msra.mxu0 0.0
      %545 = vmatprep.subr.mxu0 0.0
      %546 = vmatpush1.msra.mxu0 0.0
      %547 = vmatprep.subr.mxu0 0.0
      %548 = vmatpush1.msra.mxu0 0.0
      %549 = vmatprep.subr.mxu0 0.0
      %550 = vmatpush1.msra.mxu0 0.0
      %551 = vmatprep.subr.mxu0 0.0
      %552 = vmatpush1.msra.mxu0 0.0
      %553 = vmatprep.subr.mxu0 0.0
      %554 = vmatpush1.msra.mxu0 %v529
      %555 = vmatprep.subr.mxu0 0.0
      %556 = vmatpush1.msra.mxu0 %v528
      %557 = vmatprep.subr.mxu0 0.0
      %558 = vmatpush1.msra.mxu0 %v518
      %559 = vmatprep.subr.mxu0 0.0
      %560 = vmatpush1.msra.mxu0 %v517
      %561 = vmatprep.subr.mxu0 0.0
      %562 = vmatpush1.msra.mxu0 %v516
      %563 = vmatprep.subr.mxu0 0.0
      %564 = vmatpush1.msra.mxu0 %v515
      %565 = vmatprep.subr.mxu0 0.0
      %566 = vmatpush1.msra.mxu0 %v514
      %567 = vmatprep.subr.mxu0 0.0
      %568 = vmatpush1.msra.mxu0 %v513
      %569 = vmatprep.subr.mxu0 0.0
      %570 = vmatpush1.msra.mxu0 %v512
      %571 = vmatprep.subr.mxu0 0.0
      %572 = vmatpush1.msra.mxu0 %v511
      %573 = vmatprep.subr.mxu0 0.0
      %574 = vmatpush2.msra.mxu0 0.0
      %575 = vmatprep.subr.mxu0 0.0
      %576 = vmatpush2.msra.mxu0 0.0
      %577 = vmatprep.subr.mxu0 0.0
      %578 = vmatpush2.msra.mxu0 0.0
      %579 = vmatprep.subr.mxu0 0.0
      %580 = vmatpush2.msra.mxu0 0.0
      %581 = vmatprep.subr.mxu0 0.0
      %582 = vmatpush2.msra.mxu0 0.0
      %583 = vmatprep.subr.mxu0 0.0
      %584 = vmatpush2.msra.mxu0 0.0
      %585 = vmatprep.subr.mxu0 0.0
      %586 = vmatpush2.msra.mxu0 0.0
      %587 = vmatprep.subr.mxu0 0.0
      %588 = vmatpush2.msra.mxu0 0.0
      %589 = vmatprep.subr.mxu0 0.0
      %590 = vmatpush2.msra.mxu0 0.0
      %591 = vmatprep.subr.mxu0 0.0
      %592 = vmatpush2.msra.mxu0 0.0
      %593 = vmatprep.subr.mxu0 0.0
      %594 = vmatpush2.msra.mxu0 0.0
      %595 = vmatprep.subr.mxu0 0.0
      %596 = vmatpush2.msra.mxu0 0.0
      %597 = vmatprep.subr.mxu0 0.0
      %598 = vmatpush2.msra.mxu0 0.0
      %599 = vmatprep.subr.mxu0 0.0
      %600 = vmatpush2.msra.mxu0 0.0
      %601 = vmatprep.subr.mxu0 0.0
      %602 = vmatpush2.msra.mxu0 0.0
      %603 = vmatprep.subr.mxu0 0.0
      %604 = vmatpush2.msra.mxu0 0.0
      %605 = vmatprep.mubr.f32.mxu0 0.0
      %606 = vmatmul.mubr.f32.gmra.mxu0 %v539
      %v607 = vpop.f32.mrf.mxu0
      %v608 = vadd.f32 %v535, %v607
      %v609 = vpop.f32.mrf.mxu0
      %610 = vdwg.mxu0
      %v611 = vmax.f32 %v608, 0.0
      %v612 = vsel %vm537, %v611, 0.0
      %613 = vst [vmem:[%s426] sm:$0xff] %v612
      %614 = vrot.lane.b32.xlu0 %v453, 48
      %v615 = vpop.permute.xlu0 %614
      %616 = vrot.lane.b32.xlu0 %v438, 48
      %v617 = vpop.permute.xlu0 %616
      %v618 = vsel %vm465, %v464, %v615
      %v619 = vsel %vm465, %v615, %v617
      %v624 = vsel %vm465, 0.0, %v464
      %v625 = vsel %vm465, %v617, 0.0
      %v628 = vrot.slane %v624, 4
      %v629 = vrot.slane %v618, 4
      %v630 = vrot.slane %v619, 4
      %v631 = vrot.slane %v625, 4
      %632 = vrot.lane.b32.xlu0 %v628, 127
      %v633 = vpop.permute.xlu0 %632
      %634 = vrot.lane.b32.xlu0 %v629, 127
      %v635 = vpop.permute.xlu0 %634
      %636 = vrot.lane.b32.xlu0 %v630, 127
      %v637 = vpop.permute.xlu0 %636
      %638 = vrot.lane.b32.xlu0 %v631, 127
      %v639 = vpop.permute.xlu0 %638
      %vm640 = vcmask 1039360
      %v641 = vsel %vm640, %v633, %v635
      %v642 = vsel %vm640, %v635, %v637
      %v643 = vsel %vm640, %v637, %v639
      %648 = vrot.lane.b32.xlu0 %v624, 126
      %v649 = vpop.permute.xlu0 %648
      %650 = vrot.lane.b32.xlu0 %v618, 126
      %v651 = vpop.permute.xlu0 %650
      %652 = vrot.lane.b32.xlu0 %v619, 126
      %v653 = vpop.permute.xlu0 %652
      %654 = vrot.lane.b32.xlu0 %v625, 126
      %v655 = vpop.permute.xlu0 %654
      %vm656 = vcmask 1031168
      %v657 = vsel %vm656, %v649, %v651
      %v658 = vsel %vm656, %v651, %v653
      %v659 = vsel %vm656, %v653, %v655
      %664 = vrot.lane.b32.xlu0 %v628, 125
      %v665 = vpop.permute.xlu0 %664
      %666 = vrot.lane.b32.xlu0 %v629, 125
      %v667 = vpop.permute.xlu0 %666
      %668 = vrot.lane.b32.xlu0 %v630, 125
      %v669 = vpop.permute.xlu0 %668
      %670 = vrot.lane.b32.xlu0 %v631, 125
      %v671 = vpop.permute.xlu0 %670
      %vm672 = vcmask 1022976
      %v673 = vsel %vm672, %v665, %v667
      %v674 = vsel %vm672, %v667, %v669
      %v675 = vsel %vm672, %v669, %v671
      %680 = vrot.lane.b32.xlu0 %v624, 124
      %v681 = vpop.permute.xlu0 %680
      %682 = vrot.lane.b32.xlu0 %v618, 124
      %v683 = vpop.permute.xlu0 %682
      %684 = vrot.lane.b32.xlu0 %v619, 124
      %v685 = vpop.permute.xlu0 %684
      %686 = vrot.lane.b32.xlu0 %v625, 124
      %v687 = vpop.permute.xlu0 %686
      %vm688 = vcmask 1014784
      %v689 = vsel %vm688, %v681, %v683
      %v690 = vsel %vm688, %v683, %v685
      %v691 = vsel %vm688, %v685, %v687
      %696 = vrot.lane.b32.xlu0 %v628, 123
      %v697 = vpop.permute.xlu0 %696
      %698 = vrot.lane.b32.xlu0 %v629, 123
      %v699 = vpop.permute.xlu0 %698
      %700 = vrot.lane.b32.xlu0 %v630, 123
      %v701 = vpop.permute.xlu0 %700
      %702 = vrot.lane.b32.xlu0 %v631, 123
      %v703 = vpop.permute.xlu0 %702
      %vm704 = vcmask 1006592
      %v705 = vsel %vm704, %v697, %v699
      %v706 = vsel %vm704, %v699, %v701
      %v707 = vsel %vm704, %v701, %v703
      %712 = vrot.lane.b32.xlu0 %v624, 122
      %v713 = vpop.permute.xlu0 %712
      %714 = vrot.lane.b32.xlu0 %v618, 122
      %v715 = vpop.permute.xlu0 %714
      %716 = vrot.lane.b32.xlu0 %v619, 122
      %v717 = vpop.permute.xlu0 %716
      %718 = vrot.lane.b32.xlu0 %v625, 122
      %v719 = vpop.permute.xlu0 %718
      %vm720 = vcmask 998400
      %v721 = vsel %vm720, %v713, %v715
      %v722 = vsel %vm720, %v715, %v717
      %v723 = vsel %vm720, %v717, %v719
      %728 = vrot.lane.b32.xlu0 %v628, 121
      %v729 = vpop.permute.xlu0 %728
      %730 = vrot.lane.b32.xlu0 %v629, 121
      %v731 = vpop.permute.xlu0 %730
      %732 = vrot.lane.b32.xlu0 %v630, 121
      %v733 = vpop.permute.xlu0 %732
      %734 = vrot.lane.b32.xlu0 %v631, 121
      %v735 = vpop.permute.xlu0 %734
      %vm736 = vcmask 990208
      %v737 = vsel %vm736, %v729, %v731
      %v738 = vsel %vm736, %v731, %v733
      %v739 = vsel %vm736, %v733, %v735
      %744 = vrot.lane.b32.xlu0 %v624, 120
      %v745 = vpop.permute.xlu0 %744
      %746 = vrot.lane.b32.xlu0 %v618, 120
      %v747 = vpop.permute.xlu0 %746
      %748 = vrot.lane.b32.xlu0 %v619, 120
      %v749 = vpop.permute.xlu0 %748
      %750 = vrot.lane.b32.xlu0 %v625, 120
      %v751 = vpop.permute.xlu0 %750
      %vm752 = vcmask 982016
      %v753 = vsel %vm752, %v745, %v747
      %v754 = vsel %vm752, %v747, %v749
      %v755 = vsel %vm752, %v749, %v751
      %760 = vrot.lane.b32.xlu0 %v628, 119
      %v761 = vpop.permute.xlu0 %760
      %762 = vrot.lane.b32.xlu0 %v629, 119
      %v763 = vpop.permute.xlu0 %762
      %764 = vrot.lane.b32.xlu0 %v630, 119
      %v765 = vpop.permute.xlu0 %764
      %766 = vrot.lane.b32.xlu0 %v631, 119
      %v767 = vpop.permute.xlu0 %766
      %vm768 = vcmask 973824
      %v769 = vsel %vm768, %v761, %v763
      %v770 = vsel %vm768, %v763, %v765
      %v771 = vsel %vm768, %v765, %v767
      %v776 = vsel %vm510, %v624, %v641
      %v777 = vsel %vm510, %v618, %v642
      %v778 = vsel %vm510, %v619, %v643
      %v779 = vsel %vm510, %v625, %v639
      %v780 = vsel %vm510, %v657, %v673
      %v781 = vsel %vm510, %v658, %v674
      %v782 = vsel %vm510, %v659, %v675
      %v783 = vsel %vm510, %v655, %v671
      %v784 = vsel %vm510, %v689, %v705
      %v785 = vsel %vm510, %v690, %v706
      %v786 = vsel %vm510, %v691, %v707
      %v787 = vsel %vm510, %v687, %v703
      %v788 = vsel %vm510, %v721, %v737
      %v789 = vsel %vm510, %v722, %v738
      %v790 = vsel %vm510, %v723, %v739
      %v791 = vsel %vm510, %v719, %v735
      %v792 = vsel %vm510, %v753, %v769
      %v793 = vsel %vm510, %v754, %v770
      %v794 = vsel %vm510, %v755, %v771
      %v795 = vsel %vm510, %v751, %v767
      %v796 = vld [vmem:[%s4] sm:$0xff]
      %v797 = vld [vmem:[%s5] sm:$0xff]
      %799 = vset.pattern.permute.xlu0 0
      %800 = vperm.xlu0 %799, %v797
      %v801 = vpop.permute.xlu0 %800
      %823 = vrot.lane.b32.xlu0 %v776, 80
      %v824 = vpop.permute.xlu0 %823
      %825 = vrot.lane.b32.xlu0 %v777, 80
      %v826 = vpop.permute.xlu0 %825
      %827 = vrot.lane.b32.xlu0 %v778, 80
      %v828 = vpop.permute.xlu0 %827
      %829 = vrot.lane.b32.xlu0 %v779, 80
      %v830 = vpop.permute.xlu0 %829
      %831 = vrot.lane.b32.xlu0 %v780, 80
      %v832 = vpop.permute.xlu0 %831
      %833 = vrot.lane.b32.xlu0 %v781, 80
      %v834 = vpop.permute.xlu0 %833
      %835 = vrot.lane.b32.xlu0 %v782, 80
      %v836 = vpop.permute.xlu0 %835
      %837 = vrot.lane.b32.xlu0 %v783, 80
      %v838 = vpop.permute.xlu0 %837
      %839 = vrot.lane.b32.xlu0 %v784, 80
      %v840 = vpop.permute.xlu0 %839
      %841 = vrot.lane.b32.xlu0 %v785, 80
      %v842 = vpop.permute.xlu0 %841
      %843 = vrot.lane.b32.xlu0 %v786, 80
      %v844 = vpop.permute.xlu0 %843
      %845 = vrot.lane.b32.xlu0 %v787, 80
      %v846 = vpop.permute.xlu0 %845
      %847 = vrot.lane.b32.xlu0 %v788, 80
      %v848 = vpop.permute.xlu0 %847
      %849 = vrot.lane.b32.xlu0 %v789, 80
      %v850 = vpop.permute.xlu0 %849
      %851 = vrot.lane.b32.xlu0 %v790, 80
      %v852 = vpop.permute.xlu0 %851
      %853 = vrot.lane.b32.xlu0 %v791, 80
      %v854 = vpop.permute.xlu0 %853
      %855 = vrot.lane.b32.xlu0 %v792, 80
      %v856 = vpop.permute.xlu0 %855
      %857 = vrot.lane.b32.xlu0 %v793, 80
      %v858 = vpop.permute.xlu0 %857
      %859 = vrot.lane.b32.xlu0 %v794, 80
      %v860 = vpop.permute.xlu0 %859
      %861 = vrot.lane.b32.xlu0 %v795, 80
      %v862 = vpop.permute.xlu0 %861
      %v863 = vsel %vm537, %v824, %v826
      %v864 = vsel %vm537, %v826, %v828
      %v865 = vsel %vm537, %v828, %v830
      %v866 = vsel %vm537, %v832, %v834
      %v867 = vsel %vm537, %v834, %v836
      %v868 = vsel %vm537, %v836, %v838
      %v869 = vsel %vm537, %v840, %v842
      %v870 = vsel %vm537, %v842, %v844
      %v871 = vsel %vm537, %v844, %v846
      %v872 = vsel %vm537, %v848, %v850
      %v873 = vsel %vm537, %v850, %v852
      %v874 = vsel %vm537, %v852, %v854
      %v875 = vsel %vm537, %v856, %v858
      %v876 = vsel %vm537, %v858, %v860
      %v877 = vsel %vm537, %v860, %v862
      %vm893 = vcmask 326656
      %v895 = vsel %vm893, %v796, 0
      %897 = vmatprep.subr.mxu0 0.0
      %898 = vmatpush1.msra.mxu0 0.0
      %899 = vmatprep.subr.mxu0 0.0
      %900 = vmatpush1.msra.mxu0 0.0
      %901 = vmatprep.subr.mxu0 0.0
      %902 = vmatpush1.msra.mxu0 0.0
      %903 = vmatprep.subr.mxu0 0.0
      %904 = vmatpush1.msra.mxu0 0.0
      %905 = vmatprep.subr.mxu0 0.0
      %906 = vmatpush1.msra.mxu0 0.0
      %907 = vmatprep.subr.mxu0 0.0
      %908 = vmatpush1.msra.mxu0 0.0
      %909 = vmatprep.subr.mxu0 0.0
      %910 = vmatpush1.msra.mxu0 0.0
      %911 = vmatprep.subr.mxu0 0.0
      %912 = vmatpush1.msra.mxu0 0.0
      %913 = vmatprep.subr.mxu0 0.0
      %914 = vmatpush1.msra.mxu0 0.0
      %915 = vmatprep.subr.mxu0 0.0
      %916 = vmatpush1.msra.mxu0 0.0
      %917 = vmatprep.subr.mxu0 0.0
      %918 = vmatpush1.msra.mxu0 0.0
      %919 = vmatprep.subr.mxu0 %v876
      %920 = vmatpush1.msra.mxu0 %v875
      %921 = vmatprep.subr.mxu0 %v873
      %922 = vmatpush1.msra.mxu0 %v872
      %923 = vmatprep.subr.mxu0 %v870
      %924 = vmatpush1.msra.mxu0 %v869
      %925 = vmatprep.subr.mxu0 %v867
      %926 = vmatpush1.msra.mxu0 %v866
      %927 = vmatprep.subr.mxu0 %v864
      %928 = vmatpush1.msra.mxu0 %v863
      %929 = vmatprep.subr.mxu0 0.0
      %930 = vmatpush2.msra.mxu0 0.0
      %931 = vmatprep.subr.mxu0 0.0
      %932 = vmatpush2.msra.mxu0 0.0
      %933 = vmatprep.subr.mxu0 0.0
      %934 = vmatpush2.msra.mxu0 0.0
      %935 = vmatprep.subr.mxu0 0.0
      %936 = vmatpush2.msra.mxu0 0.0
      %937 = vmatprep.subr.mxu0 0.0
      %938 = vmatpush2.msra.mxu0 0.0
      %939 = vmatprep.subr.mxu0 0.0
      %940 = vmatpush2.msra.mxu0 0.0
      %941 = vmatprep.subr.mxu0 0.0
      %942 = vmatpush2.msra.mxu0 0.0
      %943 = vmatprep.subr.mxu0 0.0
      %944 = vmatpush2.msra.mxu0 0.0
      %945 = vmatprep.subr.mxu0 0.0
      %946 = vmatpush2.msra.mxu0 0.0
      %947 = vmatprep.subr.mxu0 0.0
      %948 = vmatpush2.msra.mxu0 0.0
      %949 = vmatprep.subr.mxu0 0.0
      %950 = vmatpush2.msra.mxu0 0.0
      %951 = vmatprep.subr.mxu0 0.0
      %952 = vmatpush2.msra.mxu0 0.0
      %953 = vmatprep.subr.mxu0 0.0
      %954 = vmatpush2.msra.mxu0 0.0
      %955 = vmatprep.subr.mxu0 0.0
      %956 = vmatpush2.msra.mxu0 0.0
      %957 = vmatprep.subr.mxu0 0.0
      %958 = vmatpush2.msra.mxu0 0.0
      %959 = vmatprep.subr.mxu0 0.0
      %960 = vmatpush2.msra.mxu0 0.0
      %961 = vmatprep.mubr.f32.mxu0 0.0
      %962 = vmatmul.mubr.f32.gmra.mxu0 %v895
      %v963 = vpop.f32.mrf.mxu0
      %v964 = vadd.f32 %v801, %v963
      %v965 = vpop.f32.mrf.mxu0
      %v966 = vadd.f32 %v801, %v965
      %967 = vdwg.mxu0
      %968 = vmatprep.subr.mxu0 0.0
      %969 = vmatpush1.msra.mxu0 0.0
      %970 = vmatprep.subr.mxu0 0.0
      %971 = vmatpush1.msra.mxu0 0.0
      %972 = vmatprep.subr.mxu0 0.0
      %973 = vmatpush1.msra.mxu0 0.0
      %974 = vmatprep.subr.mxu0 0.0
      %975 = vmatpush1.msra.mxu0 0.0
      %976 = vmatprep.subr.mxu0 0.0
      %977 = vmatpush1.msra.mxu0 0.0
      %978 = vmatprep.subr.mxu0 0.0
      %979 = vmatpush1.msra.mxu0 0.0
      %980 = vmatprep.subr.mxu0 0.0
      %981 = vmatpush1.msra.mxu0 0.0
      %982 = vmatprep.subr.mxu0 0.0
      %983 = vmatpush1.msra.mxu0 0.0
      %984 = vmatprep.subr.mxu0 0.0
      %985 = vmatpush1.msra.mxu0 0.0
      %986 = vmatprep.subr.mxu0 0.0
      %987 = vmatpush1.msra.mxu0 0.0
      %988 = vmatprep.subr.mxu0 0.0
      %989 = vmatpush1.msra.mxu0 0.0
      %990 = vmatprep.subr.mxu0 0.0
      %991 = vmatpush1.msra.mxu0 %v877
      %992 = vmatprep.subr.mxu0 0.0
      %993 = vmatpush1.msra.mxu0 %v874
      %994 = vmatprep.subr.mxu0 0.0
      %995 = vmatpush1.msra.mxu0 %v871
      %996 = vmatprep.subr.mxu0 0.0
      %997 = vmatpush1.msra.mxu0 %v868
      %998 = vmatprep.subr.mxu0 0.0
      %999 = vmatpush1.msra.mxu0 %v865
      %1000 = vmatprep.subr.mxu0 0.0
      %1001 = vmatpush2.msra.mxu0 0.0
      %1002 = vmatprep.subr.mxu0 0.0
      %1003 = vmatpush2.msra.mxu0 0.0
      %1004 = vmatprep.subr.mxu0 0.0
      %1005 = vmatpush2.msra.mxu0 0.0
      %1006 = vmatprep.subr.mxu0 0.0
      %1007 = vmatpush2.msra.mxu0 0.0
      %1008 = vmatprep.subr.mxu0 0.0
      %1009 = vmatpush2.msra.mxu0 0.0
      %1010 = vmatprep.subr.mxu0 0.0
      %1011 = vmatpush2.msra.mxu0 0.0
      %1012 = vmatprep.subr.mxu0 0.0
      %1013 = vmatpush2.msra.mxu0 0.0
      %1014 = vmatprep.subr.mxu0 0.0
      %1015 = vmatpush2.msra.mxu0 0.0
      %1016 = vmatprep.subr.mxu0 0.0
      %1017 = vmatpush2.msra.mxu0 0.0
      %1018 = vmatprep.subr.mxu0 0.0
      %1019 = vmatpush2.msra.mxu0 0.0
      %1020 = vmatprep.subr.mxu0 0.0
      %1021 = vmatpush2.msra.mxu0 0.0
      %1022 = vmatprep.subr.mxu0 0.0
      %1023 = vmatpush2.msra.mxu0 0.0
      %1024 = vmatprep.subr.mxu0 0.0
      %1025 = vmatpush2.msra.mxu0 0.0
      %1026 = vmatprep.subr.mxu0 0.0
      %1027 = vmatpush2.msra.mxu0 0.0
      %1028 = vmatprep.subr.mxu0 0.0
      %1029 = vmatpush2.msra.mxu0 0.0
      %1030 = vmatprep.subr.mxu0 0.0
      %1031 = vmatpush2.msra.mxu0 0.0
      %1032 = vmatprep.mubr.f32.mxu0 0.0
      %1033 = vmatmul.mubr.f32.gmra.mxu0 %v895
      %v1034 = vpop.f32.mrf.mxu0
      %v1035 = vadd.f32 %v801, %v1034
      %v1036 = vpop.f32.mrf.mxu0
      %1037 = vdwg.mxu0
      %v1038 = vmax.f32 %v964, 0.0
      %v1039 = vmax.f32 %v966, 0.0
      %v1040 = vmax.f32 %v1035, 0.0
      %1041 = vst [vmem:[%s431] sm:$0xff] %v1038
      %1042 = vst [vmem:[%s431 + $0x8] sm:$0xff] %v1039
      %1043 = vst [vmem:[%s431 + $0x10] sm:$0xff] %v1040
      %1044 = vrot.lane.b32.xlu0 %v628, 112
      %v1045 = vpop.permute.xlu0 %1044
      %1046 = vrot.lane.b32.xlu0 %v629, 112
      %v1047 = vpop.permute.xlu0 %1046
      %1048 = vrot.lane.b32.xlu0 %v630, 112
      %v1049 = vpop.permute.xlu0 %1048
      %1050 = vrot.lane.b32.xlu0 %v631, 112
      %v1051 = vpop.permute.xlu0 %1050
      %vm1052 = vcmask 916480
      %v1053 = vsel %vm1052, %v1045, %v1047
      %v1054 = vsel %vm1052, %v1047, %v1049
      %v1055 = vsel %vm1052, %v1049, %v1051
      %1060 = vrot.lane.b32.xlu0 %v624, 96
      %v1061 = vpop.permute.xlu0 %1060
      %1062 = vrot.lane.b32.xlu0 %v618, 96
      %v1063 = vpop.permute.xlu0 %1062
      %1064 = vrot.lane.b32.xlu0 %v619, 96
      %v1065 = vpop.permute.xlu0 %1064
      %1066 = vrot.lane.b32.xlu0 %v625, 96
      %v1067 = vpop.permute.xlu0 %1066
      %vm1068 = vcmask 785408
      %v1069 = vsel %vm1068, %v1061, %v1063
      %v1070 = vsel %vm1068, %v1063, %v1065
      %v1071 = vsel %vm1068, %v1065, %v1067
      %1076 = vrot.lane.b32.xlu0 %v628, 80
      %v1077 = vpop.permute.xlu0 %1076
      %1078 = vrot.lane.b32.xlu0 %v629, 80
      %v1079 = vpop.permute.xlu0 %1078
      %1080 = vrot.lane.b32.xlu0 %v630, 80
      %v1081 = vpop.permute.xlu0 %1080
      %1082 = vrot.lane.b32.xlu0 %v631, 80
      %v1083 = vpop.permute.xlu0 %1082
      %v1084 = vsel %vm537, %v1077, %v1079
      %v1085 = vsel %vm537, %v1079, %v1081
      %v1086 = vsel %vm537, %v1081, %v1083
      %1091 = vrot.lane.b32.xlu0 %v624, 64
      %v1092 = vpop.permute.xlu0 %1091
      %1093 = vrot.lane.b32.xlu0 %v618, 64
      %v1094 = vpop.permute.xlu0 %1093
      %1095 = vrot.lane.b32.xlu0 %v619, 64
      %v1096 = vpop.permute.xlu0 %1095
      %1097 = vrot.lane.b32.xlu0 %v625, 64
      %v1098 = vpop.permute.xlu0 %1097
      %v1099 = vsel %vm458, %v1092, %v1094
      %v1100 = vsel %vm458, %v1094, %v1096
      %v1101 = vsel %vm458, %v1096, %v1098
      %v1106 = vsel %vm510, %v624, %v1053
      %v1107 = vsel %vm510, %v618, %v1054
      %v1108 = vsel %vm510, %v619, %v1055
      %v1109 = vsel %vm510, %v625, %v1051
      %v1110 = vsel %vm510, %v1069, %v1084
      %v1111 = vsel %vm510, %v1070, %v1085
      %v1112 = vsel %vm510, %v1071, %v1086
      %v1113 = vsel %vm510, %v1067, %v1083
      %v1114 = vlaneseq
      %v1115 = vshrl.u32 %v1114, 7
      %v1116 = vsub.s32 0, %v1115
      %v1117 = vrot.slane %v439, %v1116
      %v1118 = vlaneseq
      %v1119 = vshrl.u32 %v1118, 7
      %v1120 = vsub.s32 0, %v1119
      %v1121 = vrot.slane %v440, %v1120
      %v1122 = vlaneseq
      %v1123 = vshrl.u32 %v1122, 7
      %v1124 = vsub.s32 0, %v1123
      %v1125 = vrot.slane %v441, %v1124
      %1129 = vrot.lane.b32.xlu0 %v1117, 14
      %v1130 = vpop.permute.xlu0 %1129
      %1131 = vrot.lane.b32.xlu0 %v1121, 14
      %v1132 = vpop.permute.xlu0 %1131
      %1133 = vrot.lane.b32.xlu0 %v1125, 14
      %v1134 = vpop.permute.xlu0 %1133
      %vm1135 = vcmask 113664
      %v1136 = vsel %vm1135, %v1130, %v1132
      %v1137 = vsel %vm1135, %v1132, %v1134
      %v1142 = vmul.f32 %v1106, %v1130
      %v1143 = vmul.f32 %v1107, %v1136
      %v1144 = vmul.f32 %v1108, %v1137
      %v1145 = vmul.f32 %v1109, %v1134
      %v1146 = vmul.f32 %v1110, %v1130
      %v1147 = vmul.f32 %v1111, %v1136
      %v1148 = vmul.f32 %v1112, %v1137
      %v1149 = vmul.f32 %v1113, %v1134
      %v1150 = vmul.f32 %v1099, %v1130
      %v1151 = vmul.f32 %v1100, %v1136
      %v1152 = vmul.f32 %v1101, %v1137
      %v1153 = vmul.f32 %v1098, %v1134
      %v1154 = vlaneseq
      %v1155 = vshrl.u32 %v1154, 7
      %v1156 = vsub.s32 1, %v1155
      %v1157 = vrot.slane %v439, %v1156
      %v1158 = vlaneseq
      %v1159 = vshrl.u32 %v1158, 7
      %v1160 = vsub.s32 1, %v1159
      %v1161 = vrot.slane %v440, %v1160
      %v1162 = vlaneseq
      %v1163 = vshrl.u32 %v1162, 7
      %v1164 = vsub.s32 1, %v1163
      %v1165 = vrot.slane %v441, %v1164
      %1169 = vrot.lane.b32.xlu0 %v1157, 15
      %v1170 = vpop.permute.xlu0 %1169
      %1171 = vrot.lane.b32.xlu0 %v1161, 15
      %v1172 = vpop.permute.xlu0 %1171
      %1173 = vrot.lane.b32.xlu0 %v1165, 15
      %v1174 = vpop.permute.xlu0 %1173
      %vm1175 = vcmask 121856
      %v1176 = vsel %vm1175, %v1170, %v1172
      %v1177 = vsel %vm1175, %v1172, %v1174
      %v1182 = vmul.f32 %v1106, %v1170
      %v1183 = vmul.f32 %v1107, %v1176
      %v1184 = vmul.f32 %v1108, %v1177
      %v1185 = vmul.f32 %v1109, %v1174
      %v1186 = vmul.f32 %v1110, %v1170
      %v1187 = vmul.f32 %v1111, %v1176
      %v1188 = vmul.f32 %v1112, %v1177
      %v1189 = vmul.f32 %v1113, %v1174
      %v1190 = vmul.f32 %v1099, %v1170
      %v1191 = vmul.f32 %v1100, %v1176
      %v1192 = vmul.f32 %v1101, %v1177
      %v1193 = vmul.f32 %v1098, %v1174
      %v1194 = vlaneseq
      %v1195 = vshrl.u32 %v1194, 7
      %v1196 = vsub.s32 2, %v1195
      %v1197 = vrot.slane %v439, %v1196
      %v1198 = vlaneseq
      %v1199 = vshrl.u32 %v1198, 7
      %v1200 = vsub.s32 2, %v1199
      %v1201 = vrot.slane %v440, %v1200
      %v1202 = vlaneseq
      %v1203 = vshrl.u32 %v1202, 7
      %v1204 = vsub.s32 2, %v1203
      %v1205 = vrot.slane %v441, %v1204
      %1209 = vrot.lane.b32.xlu0 %v1197, 17
      %v1210 = vpop.permute.xlu0 %1209
      %1211 = vrot.lane.b32.xlu0 %v1201, 17
      %v1212 = vpop.permute.xlu0 %1211
      %1213 = vrot.lane.b32.xlu0 %v1205, 17
      %v1214 = vpop.permute.xlu0 %1213
      %vm1215 = vcmask 138240
      %v1216 = vsel %vm1215, %v1210, %v1212
      %v1217 = vsel %vm1215, %v1212, %v1214
      %v1222 = vmul.f32 %v1106, %v1210
      %v1223 = vmul.f32 %v1107, %v1216
      %v1224 = vmul.f32 %v1108, %v1217
      %v1225 = vmul.f32 %v1109, %v1214
      %v1226 = vmul.f32 %v1110, %v1210
      %v1227 = vmul.f32 %v1111, %v1216
      %v1228 = vmul.f32 %v1112, %v1217
      %v1229 = vmul.f32 %v1113, %v1214
      %v1230 = vmul.f32 %v1099, %v1210
      %v1231 = vmul.f32 %v1100, %v1216
      %v1232 = vmul.f32 %v1101, %v1217
      %v1233 = vmul.f32 %v1098, %v1214
      %v1234 = vlaneseq
      %v1235 = vshrl.u32 %v1234, 7
      %v1236 = vsub.s32 3, %v1235
      %v1237 = vrot.slane %v439, %v1236
      %v1238 = vlaneseq
      %v1239 = vshrl.u32 %v1238, 7
      %v1240 = vsub.s32 3, %v1239
      %v1241 = vrot.slane %v440, %v1240
      %v1242 = vlaneseq
      %v1243 = vshrl.u32 %v1242, 7
      %v1244 = vsub.s32 3, %v1243
      %v1245 = vrot.slane %v441, %v1244
      %1249 = vrot.lane.b32.xlu0 %v1237, 18
      %v1250 = vpop.permute.xlu0 %1249
      %1251 = vrot.lane.b32.xlu0 %v1241, 18
      %v1252 = vpop.permute.xlu0 %1251
      %1253 = vrot.lane.b32.xlu0 %v1245, 18
      %v1254 = vpop.permute.xlu0 %1253
      %vm1255 = vcmask 146432
      %v1256 = vsel %vm1255, %v1250, %v1252
      %v1257 = vsel %vm1255, %v1252, %v1254
      %v1262 = vmul.f32 %v1106, %v1250
      %v1263 = vmul.f32 %v1107, %v1256
      %v1264 = vmul.f32 %v1108, %v1257
      %v1265 = vmul.f32 %v1109, %v1254
      %v1266 = vmul.f32 %v1110, %v1250
      %v1267 = vmul.f32 %v1111, %v1256
      %v1268 = vmul.f32 %v1112, %v1257
      %v1269 = vmul.f32 %v1113, %v1254
      %v1270 = vmul.f32 %v1099, %v1250
      %v1271 = vmul.f32 %v1100, %v1256
      %v1272 = vmul.f32 %v1101, %v1257
      %v1273 = vmul.f32 %v1098, %v1254
      %v1286 = vrot.slane %v1182, 4
      %v1287 = vrot.slane %v1183, 4
      %v1288 = vrot.slane %v1184, 4
      %v1289 = vrot.slane %v1185, 4
      %v1290 = vrot.slane %v1186, 4
      %v1291 = vsel %vm510, %v1286, %v1290
      %v1292 = vrot.slane %v1187, 4
      %v1293 = vsel %vm510, %v1287, %v1292
      %v1294 = vrot.slane %v1188, 4
      %v1295 = vsel %vm510, %v1288, %v1294
      %v1296 = vrot.slane %v1189, 4
      %v1297 = vsel %vm510, %v1289, %v1296
      %v1298 = vrot.slane %v1190, 4
      %v1299 = vsel %vm510, %v1290, %v1298
      %v1300 = vrot.slane %v1191, 4
      %v1301 = vsel %vm510, %v1292, %v1300
      %v1302 = vrot.slane %v1192, 4
      %v1303 = vsel %vm510, %v1294, %v1302
      %v1304 = vrot.slane %v1193, 4
      %v1305 = vsel %vm510, %v1296, %v1304
      %1306 = vrot.lane.b32.xlu0 %v1286, 127
      %v1307 = vpop.permute.xlu0 %1306
      %1308 = vrot.lane.b32.xlu0 %v1287, 127
      %v1309 = vpop.permute.xlu0 %1308
      %1310 = vrot.lane.b32.xlu0 %v1288, 127
      %v1311 = vpop.permute.xlu0 %1310
      %1312 = vrot.lane.b32.xlu0 %v1289, 127
      %v1313 = vpop.permute.xlu0 %1312
      %1314 = vrot.lane.b32.xlu0 %v1291, 127
      %v1315 = vpop.permute.xlu0 %1314
      %1316 = vrot.lane.b32.xlu0 %v1293, 127
      %v1317 = vpop.permute.xlu0 %1316
      %1318 = vrot.lane.b32.xlu0 %v1295, 127
      %v1319 = vpop.permute.xlu0 %1318
      %1320 = vrot.lane.b32.xlu0 %v1297, 127
      %v1321 = vpop.permute.xlu0 %1320
      %1322 = vrot.lane.b32.xlu0 %v1299, 127
      %v1323 = vpop.permute.xlu0 %1322
      %1324 = vrot.lane.b32.xlu0 %v1301, 127
      %v1325 = vpop.permute.xlu0 %1324
      %1326 = vrot.lane.b32.xlu0 %v1303, 127
      %v1327 = vpop.permute.xlu0 %1326
      %1328 = vrot.lane.b32.xlu0 %v1305, 127
      %v1329 = vpop.permute.xlu0 %1328
      %v1330 = vsel %vm640, %v1307, %v1309
      %v1331 = vsel %vm640, %v1309, %v1311
      %v1332 = vsel %vm640, %v1311, %v1313
      %v1333 = vsel %vm640, %v1315, %v1317
      %v1334 = vsel %vm640, %v1317, %v1319
      %v1335 = vsel %vm640, %v1319, %v1321
      %v1336 = vsel %vm640, %v1323, %v1325
      %v1337 = vsel %vm640, %v1325, %v1327
      %v1338 = vsel %vm640, %v1327, %v1329
      %1351 = vrot.lane.b32.xlu0 %v1106, 126
      %v1352 = vpop.permute.xlu0 %1351
      %1353 = vrot.lane.b32.xlu0 %v1107, 126
      %v1354 = vpop.permute.xlu0 %1353
      %1355 = vrot.lane.b32.xlu0 %v1108, 126
      %v1356 = vpop.permute.xlu0 %1355
      %1357 = vrot.lane.b32.xlu0 %v1109, 126
      %v1358 = vpop.permute.xlu0 %1357
      %1359 = vrot.lane.b32.xlu0 %v1110, 126
      %v1360 = vpop.permute.xlu0 %1359
      %1361 = vrot.lane.b32.xlu0 %v1111, 126
      %v1362 = vpop.permute.xlu0 %1361
      %1363 = vrot.lane.b32.xlu0 %v1112, 126
      %v1364 = vpop.permute.xlu0 %1363
      %1365 = vrot.lane.b32.xlu0 %v1113, 126
      %v1366 = vpop.permute.xlu0 %1365
      %1367 = vrot.lane.b32.xlu0 %v1099, 126
      %v1368 = vpop.permute.xlu0 %1367
      %1369 = vrot.lane.b32.xlu0 %v1100, 126
      %v1370 = vpop.permute.xlu0 %1369
      %1371 = vrot.lane.b32.xlu0 %v1101, 126
      %v1372 = vpop.permute.xlu0 %1371
      %1373 = vrot.lane.b32.xlu0 %v1098, 126
      %v1374 = vpop.permute.xlu0 %1373
      %v1375 = vsel %vm656, %v1352, %v1354
      %v1376 = vsel %vm656, %v1354, %v1356
      %v1377 = vsel %vm656, %v1356, %v1358
      %v1378 = vsel %vm656, %v1360, %v1362
      %v1379 = vsel %vm656, %v1362, %v1364
      %v1380 = vsel %vm656, %v1364, %v1366
      %v1381 = vsel %vm656, %v1368, %v1370
      %v1382 = vsel %vm656, %v1370, %v1372
      %v1383 = vsel %vm656, %v1372, %v1374
      %v1400 = vrot.slane %v1222, 4
      %v1401 = vrot.slane %v1223, 4
      %v1402 = vrot.slane %v1224, 4
      %v1403 = vrot.slane %v1225, 4
      %v1404 = vrot.slane %v1226, 4
      %v1405 = vsel %vm510, %v1400, %v1404
      %v1406 = vrot.slane %v1227, 4
      %v1407 = vsel %vm510, %v1401, %v1406
      %v1408 = vrot.slane %v1228, 4
      %v1409 = vsel %vm510, %v1402, %v1408
      %v1410 = vrot.slane %v1229, 4
      %v1411 = vsel %vm510, %v1403, %v1410
      %v1412 = vrot.slane %v1230, 4
      %v1413 = vsel %vm510, %v1404, %v1412
      %v1414 = vrot.slane %v1231, 4
      %v1415 = vsel %vm510, %v1406, %v1414
      %v1416 = vrot.slane %v1232, 4
      %v1417 = vsel %vm510, %v1408, %v1416
      %v1418 = vrot.slane %v1233, 4
      %v1419 = vsel %vm510, %v1410, %v1418
      %1420 = vrot.lane.b32.xlu0 %v1400, 125
      %v1421 = vpop.permute.xlu0 %1420
      %1422 = vrot.lane.b32.xlu0 %v1401, 125
      %v1423 = vpop.permute.xlu0 %1422
      %1424 = vrot.lane.b32.xlu0 %v1402, 125
      %v1425 = vpop.permute.xlu0 %1424
      %1426 = vrot.lane.b32.xlu0 %v1403, 125
      %v1427 = vpop.permute.xlu0 %1426
      %1428 = vrot.lane.b32.xlu0 %v1405, 125
      %v1429 = vpop.permute.xlu0 %1428
      %1430 = vrot.lane.b32.xlu0 %v1407, 125
      %v1431 = vpop.permute.xlu0 %1430
      %1432 = vrot.lane.b32.xlu0 %v1409, 125
      %v1433 = vpop.permute.xlu0 %1432
      %1434 = vrot.lane.b32.xlu0 %v1411, 125
      %v1435 = vpop.permute.xlu0 %1434
      %1436 = vrot.lane.b32.xlu0 %v1413, 125
      %v1437 = vpop.permute.xlu0 %1436
      %1438 = vrot.lane.b32.xlu0 %v1415, 125
      %v1439 = vpop.permute.xlu0 %1438
      %1440 = vrot.lane.b32.xlu0 %v1417, 125
      %v1441 = vpop.permute.xlu0 %1440
      %1442 = vrot.lane.b32.xlu0 %v1419, 125
      %v1443 = vpop.permute.xlu0 %1442
      %v1444 = vsel %vm672, %v1421, %v1423
      %v1445 = vsel %vm672, %v1423, %v1425
      %v1446 = vsel %vm672, %v1425, %v1427
      %v1447 = vsel %vm672, %v1429, %v1431
      %v1448 = vsel %vm672, %v1431, %v1433
      %v1449 = vsel %vm672, %v1433, %v1435
      %v1450 = vsel %vm672, %v1437, %v1439
      %v1451 = vsel %vm672, %v1439, %v1441
      %v1452 = vsel %vm672, %v1441, %v1443
      %1469 = vrot.lane.b32.xlu0 %v1262, 124
      %v1470 = vpop.permute.xlu0 %1469
      %1471 = vrot.lane.b32.xlu0 %v1263, 124
      %v1472 = vpop.permute.xlu0 %1471
      %1473 = vrot.lane.b32.xlu0 %v1264, 124
      %v1474 = vpop.permute.xlu0 %1473
      %1475 = vrot.lane.b32.xlu0 %v1265, 124
      %v1476 = vpop.permute.xlu0 %1475
      %1477 = vrot.lane.b32.xlu0 %v1266, 124
      %v1478 = vpop.permute.xlu0 %1477
      %1479 = vrot.lane.b32.xlu0 %v1267, 124
      %v1480 = vpop.permute.xlu0 %1479
      %1481 = vrot.lane.b32.xlu0 %v1268, 124
      %v1482 = vpop.permute.xlu0 %1481
      %1483 = vrot.lane.b32.xlu0 %v1269, 124
      %v1484 = vpop.permute.xlu0 %1483
      %1485 = vrot.lane.b32.xlu0 %v1270, 124
      %v1486 = vpop.permute.xlu0 %1485
      %1487 = vrot.lane.b32.xlu0 %v1271, 124
      %v1488 = vpop.permute.xlu0 %1487
      %1489 = vrot.lane.b32.xlu0 %v1272, 124
      %v1490 = vpop.permute.xlu0 %1489
      %1491 = vrot.lane.b32.xlu0 %v1273, 124
      %v1492 = vpop.permute.xlu0 %1491
      %v1493 = vsel %vm688, %v1470, %v1472
      %v1494 = vsel %vm688, %v1472, %v1474
      %v1495 = vsel %vm688, %v1474, %v1476
      %v1496 = vsel %vm688, %v1478, %v1480
      %v1497 = vsel %vm688, %v1480, %v1482
      %v1498 = vsel %vm688, %v1482, %v1484
      %v1499 = vsel %vm688, %v1486, %v1488
      %v1500 = vsel %vm688, %v1488, %v1490
      %v1501 = vsel %vm688, %v1490, %v1492
      %v1502 = vsel %vm510, %v1150, %v1330
      %v1503 = vsel %vm510, %v1151, %v1331
      %v1504 = vsel %vm510, %v1152, %v1332
      %v1505 = vsel %vm510, %v1153, %v1313
      %v1506 = vsel %vm510, %v1381, %v1444
      %v1507 = vsel %vm510, %v1382, %v1445
      %v1508 = vsel %vm510, %v1383, %v1446
      %v1509 = vsel %vm510, %v1374, %v1427
      %v1510 = vld [vmem:[%s6] sm:$0xff]
      %v1511 = vld [vmem:[%s6 + $0x8] sm:$0xff]
      %v1512 = vld [vmem:[%s7] sm:$0xff]
      %v1513 = vld [vmem:[%s7 + $0x8] sm:$0xff]
      %1515 = vset.pattern.permute.xlu0 0
      %1516 = vperm.xlu0 %1515, %v1512
      %v1517 = vpop.permute.xlu0 %1516
      %1520 = vset.pattern.permute.xlu0 0
      %1521 = vperm.xlu0 %1520, %v1513
      %v1522 = vpop.permute.xlu0 %1521
      %1540 = vrot.lane.b32.xlu0 %v1142, 114
      %v1541 = vpop.permute.xlu0 %1540
      %1542 = vrot.lane.b32.xlu0 %v1143, 114
      %v1543 = vpop.permute.xlu0 %1542
      %1544 = vrot.lane.b32.xlu0 %v1144, 114
      %v1545 = vpop.permute.xlu0 %1544
      %1546 = vrot.lane.b32.xlu0 %v1145, 114
      %v1547 = vpop.permute.xlu0 %1546
      %1548 = vrot.lane.b32.xlu0 %v1146, 114
      %v1549 = vpop.permute.xlu0 %1548
      %1550 = vrot.lane.b32.xlu0 %v1147, 114
      %v1551 = vpop.permute.xlu0 %1550
      %1552 = vrot.lane.b32.xlu0 %v1148, 114
      %v1553 = vpop.permute.xlu0 %1552
      %1554 = vrot.lane.b32.xlu0 %v1149, 114
      %v1555 = vpop.permute.xlu0 %1554
      %1556 = vrot.lane.b32.xlu0 %v1502, 114
      %v1557 = vpop.permute.xlu0 %1556
      %1558 = vrot.lane.b32.xlu0 %v1503, 114
      %v1559 = vpop.permute.xlu0 %1558
      %1560 = vrot.lane.b32.xlu0 %v1504, 114
      %v1561 = vpop.permute.xlu0 %1560
      %1562 = vrot.lane.b32.xlu0 %v1505, 114
      %v1563 = vpop.permute.xlu0 %1562
      %1564 = vrot.lane.b32.xlu0 %v1333, 114
      %v1565 = vpop.permute.xlu0 %1564
      %1566 = vrot.lane.b32.xlu0 %v1334, 114
      %v1567 = vpop.permute.xlu0 %1566
      %1568 = vrot.lane.b32.xlu0 %v1335, 114
      %v1569 = vpop.permute.xlu0 %1568
      %1570 = vrot.lane.b32.xlu0 %v1321, 114
      %v1571 = vpop.permute.xlu0 %1570
      %1572 = vrot.lane.b32.xlu0 %v1336, 114
      %v1573 = vpop.permute.xlu0 %1572
      %1574 = vrot.lane.b32.xlu0 %v1337, 114
      %v1575 = vpop.permute.xlu0 %1574
      %1576 = vrot.lane.b32.xlu0 %v1338, 114
      %v1577 = vpop.permute.xlu0 %1576
      %1578 = vrot.lane.b32.xlu0 %v1329, 114
      %v1579 = vpop.permute.xlu0 %1578
      %1580 = vrot.lane.b32.xlu0 %v1375, 114
      %v1581 = vpop.permute.xlu0 %1580
      %1582 = vrot.lane.b32.xlu0 %v1376, 114
      %v1583 = vpop.permute.xlu0 %1582
      %1584 = vrot.lane.b32.xlu0 %v1377, 114
      %v1585 = vpop.permute.xlu0 %1584
      %1586 = vrot.lane.b32.xlu0 %v1358, 114
      %v1587 = vpop.permute.xlu0 %1586
      %1588 = vrot.lane.b32.xlu0 %v1378, 114
      %v1589 = vpop.permute.xlu0 %1588
      %1590 = vrot.lane.b32.xlu0 %v1379, 114
      %v1591 = vpop.permute.xlu0 %1590
      %1592 = vrot.lane.b32.xlu0 %v1380, 114
      %v1593 = vpop.permute.xlu0 %1592
      %1594 = vrot.lane.b32.xlu0 %v1366, 114
      %v1595 = vpop.permute.xlu0 %1594
      %1596 = vrot.lane.b32.xlu0 %v1506, 114
      %v1597 = vpop.permute.xlu0 %1596
      %1598 = vrot.lane.b32.xlu0 %v1507, 114
      %v1599 = vpop.permute.xlu0 %1598
      %1600 = vrot.lane.b32.xlu0 %v1508, 114
      %v1601 = vpop.permute.xlu0 %1600
      %1602 = vrot.lane.b32.xlu0 %v1509, 114
      %v1603 = vpop.permute.xlu0 %1602
      %1604 = vrot.lane.b32.xlu0 %v1447, 114
      %v1605 = vpop.permute.xlu0 %1604
      %1606 = vrot.lane.b32.xlu0 %v1448, 114
      %v1607 = vpop.permute.xlu0 %1606
      %1608 = vrot.lane.b32.xlu0 %v1449, 114
      %v1609 = vpop.permute.xlu0 %1608
      %1610 = vrot.lane.b32.xlu0 %v1435, 114
      %v1611 = vpop.permute.xlu0 %1610
      %1612 = vrot.lane.b32.xlu0 %v1450, 114
      %v1613 = vpop.permute.xlu0 %1612
      %1614 = vrot.lane.b32.xlu0 %v1451, 114
      %v1615 = vpop.permute.xlu0 %1614
      %1616 = vrot.lane.b32.xlu0 %v1452, 114
      %v1617 = vpop.permute.xlu0 %1616
      %1618 = vrot.lane.b32.xlu0 %v1443, 114
      %v1619 = vpop.permute.xlu0 %1618
      %1620 = vrot.lane.b32.xlu0 %v1493, 114
      %v1621 = vpop.permute.xlu0 %1620
      %1622 = vrot.lane.b32.xlu0 %v1494, 114
      %v1623 = vpop.permute.xlu0 %1622
      %1624 = vrot.lane.b32.xlu0 %v1495, 114
      %v1625 = vpop.permute.xlu0 %1624
      %1626 = vrot.lane.b32.xlu0 %v1476, 114
      %v1627 = vpop.permute.xlu0 %1626
      %1628 = vrot.lane.b32.xlu0 %v1496, 114
      %v1629 = vpop.permute.xlu0 %1628
      %1630 = vrot.lane.b32.xlu0 %v1497, 114
      %v1631 = vpop.permute.xlu0 %1630
      %1632 = vrot.lane.b32.xlu0 %v1498, 114
      %v1633 = vpop.permute.xlu0 %1632
      %1634 = vrot.lane.b32.xlu0 %v1484, 114
      %v1635 = vpop.permute.xlu0 %1634
      %1636 = vrot.lane.b32.xlu0 %v1499, 114
      %v1637 = vpop.permute.xlu0 %1636
      %1638 = vrot.lane.b32.xlu0 %v1500, 114
      %v1639 = vpop.permute.xlu0 %1638
      %1640 = vrot.lane.b32.xlu0 %v1501, 114
      %v1641 = vpop.permute.xlu0 %1640
      %1642 = vrot.lane.b32.xlu0 %v1492, 114
      %v1643 = vpop.permute.xlu0 %1642
      %vm1644 = vcmask 932864
      %v1645 = vsel %vm1644, %v1541, %v1543
      %v1646 = vsel %vm1644, %v1543, %v1545
      %v1647 = vsel %vm1644, %v1545, %v1547
      %v1648 = vsel %vm1644, %v1549, %v1551
      %v1649 = vsel %vm1644, %v1551, %v1553
      %v1650 = vsel %vm1644, %v1553, %v1555
      %v1651 = vsel %vm1644, %v1557, %v1559
      %v1652 = vsel %vm1644, %v1559, %v1561
      %v1653 = vsel %vm1644, %v1561, %v1563
      %v1654 = vsel %vm1644, %v1565, %v1567
      %v1655 = vsel %vm1644, %v1567, %v1569
      %v1656 = vsel %vm1644, %v1569, %v1571
      %v1657 = vsel %vm1644, %v1573, %v1575
      %v1658 = vsel %vm1644, %v1575, %v1577
      %v1659 = vsel %vm1644, %v1577, %v1579
      %v1660 = vsel %vm1644, %v1581, %v1583
      %v1661 = vsel %vm1644, %v1583, %v1585
      %v1662 = vsel %vm1644, %v1585, %v1587
      %v1663 = vsel %vm1644, %v1589, %v1591
      %v1664 = vsel %vm1644, %v1591, %v1593
      %v1665 = vsel %vm1644, %v1593, %v1595
      %v1666 = vsel %vm1644, %v1597, %v1599
      %v1667 = vsel %vm1644, %v1599, %v1601
      %v1668 = vsel %vm1644, %v1601, %v1603
      %v1669 = vsel %vm1644, %v1605, %v1607
      %v1670 = vsel %vm1644, %v1607, %v1609
      %v1671 = vsel %vm1644, %v1609, %v1611
      %v1672 = vsel %vm1644, %v1613, %v1615
      %v1673 = vsel %vm1644, %v1615, %v1617
      %v1674 = vsel %vm1644, %v1617, %v1619
      %v1675 = vsel %vm1644, %v1621, %v1623
      %v1676 = vsel %vm1644, %v1623, %v1625
      %v1677 = vsel %vm1644, %v1625, %v1627
      %v1678 = vsel %vm1644, %v1629, %v1631
      %v1679 = vsel %vm1644, %v1631, %v1633
      %v1680 = vsel %vm1644, %v1633, %v1635
      %v1681 = vsel %vm1644, %v1637, %v1639
      %v1682 = vsel %vm1644, %v1639, %v1641
      %v1683 = vsel %vm1644, %v1641, %v1643
      %vm1720 = vcmask 818176
      %v1722 = vsel %vm1720, %v1510, 0
      %v1725 = vsel %vm1720, %v1511, 0
      %v1727 = vsel %vm510, %v1681, 0
      %v1729 = vsel %vm510, %v1682, 0
      %v1731 = vsel %vm510, %v1683, 0
      %1733 = vmatprep.subr.mxu0 0.0
      %1734 = vmatpush1.msra.mxu0 0.0
      %1735 = vmatprep.subr.mxu0 0.0
      %1736 = vmatpush1.msra.mxu0 0.0
      %1737 = vmatprep.subr.mxu0 0.0
      %1738 = vmatpush1.msra.mxu0 0.0
      %1739 = vmatprep.subr.mxu0 %v1729
      %1740 = vmatpush1.msra.mxu0 %v1727
      %1741 = vmatprep.subr.mxu0 %v1679
      %1742 = vmatpush1.msra.mxu0 %v1678
      %1743 = vmatprep.subr.mxu0 %v1676
      %1744 = vmatpush1.msra.mxu0 %v1675
      %1745 = vmatprep.subr.mxu0 %v1673
      %1746 = vmatpush1.msra.mxu0 %v1672
      %1747 = vmatprep.subr.mxu0 %v1670
      %1748 = vmatpush1.msra.mxu0 %v1669
      %1749 = vmatprep.subr.mxu0 %v1667
      %1750 = vmatpush1.msra.mxu0 %v1666
      %1751 = vmatprep.subr.mxu0 %v1664
      %1752 = vmatpush1.msra.mxu0 %v1663
      %1753 = vmatprep.subr.mxu0 %v1661
      %1754 = vmatpush1.msra.mxu0 %v1660
      %1755 = vmatprep.subr.mxu0 %v1658
      %1756 = vmatpush1.msra.mxu0 %v1657
      %1757 = vmatprep.subr.mxu0 %v1655
      %1758 = vmatpush1.msra.mxu0 %v1654
      %1759 = vmatprep.subr.mxu0 %v1652
      %1760 = vmatpush1.msra.mxu0 %v1651
      %1761 = vmatprep.subr.mxu0 %v1649
      %1762 = vmatpush1.msra.mxu0 %v1648
      %1763 = vmatprep.subr.mxu0 %v1646
      %1764 = vmatpush1.msra.mxu0 %v1645
      %1765 = vmatprep.subr.mxu0 0.0
      %1766 = vmatpush2.msra.mxu0 0.0
      %1767 = vmatprep.subr.mxu0 0.0
      %1768 = vmatpush2.msra.mxu0 0.0
      %1769 = vmatprep.subr.mxu0 0.0
      %1770 = vmatpush2.msra.mxu0 0.0
      %1771 = vmatprep.subr.mxu0 0.0
      %1772 = vmatpush2.msra.mxu0 0.0
      %1773 = vmatprep.subr.mxu0 0.0
      %1774 = vmatpush2.msra.mxu0 0.0
      %1775 = vmatprep.subr.mxu0 0.0
      %1776 = vmatpush2.msra.mxu0 0.0
      %1777 = vmatprep.subr.mxu0 0.0
      %1778 = vmatpush2.msra.mxu0 0.0
      %1779 = vmatprep.subr.mxu0 0.0
      %1780 = vmatpush2.msra.mxu0 0.0
      %1781 = vmatprep.subr.mxu0 0.0
      %1782 = vmatpush2.msra.mxu0 0.0
      %1783 = vmatprep.subr.mxu0 0.0
      %1784 = vmatpush2.msra.mxu0 0.0
      %1785 = vmatprep.subr.mxu0 0.0
      %1786 = vmatpush2.msra.mxu0 0.0
      %1787 = vmatprep.subr.mxu0 0.0
      %1788 = vmatpush2.msra.mxu0 0.0
      %1789 = vmatprep.subr.mxu0 0.0
      %1790 = vmatpush2.msra.mxu0 0.0
      %1791 = vmatprep.subr.mxu0 0.0
      %1792 = vmatpush2.msra.mxu0 0.0
      %1793 = vmatprep.subr.mxu0 0.0
      %1794 = vmatpush2.msra.mxu0 0.0
      %1795 = vmatprep.subr.mxu0 0.0
      %1796 = vmatpush2.msra.mxu0 0.0
      %1797 = vmatprep.mubr.f32.mxu0 0.0
      %1798 = vmatmul.mubr.f32.gmra.mxu0 %v1722
      %v1799 = vpop.f32.mrf.mxu0
      %v1800 = vadd.f32 %v1517, %v1799
      %v1801 = vpop.f32.mrf.mxu0
      %v1802 = vadd.f32 %v1517, %v1801
      %1803 = vmatprep.mubr.f32.mxu0 0.0
      %1804 = vmatmul.mubr.f32.gmra.mxu0 %v1725
      %v1805 = vpop.f32.mrf.mxu0
      %v1806 = vadd.f32 %v1522, %v1805
      %v1807 = vpop.f32.mrf.mxu0
      %v1808 = vadd.f32 %v1522, %v1807
      %1809 = vdwg.mxu0
      %1810 = vmatprep.subr.mxu0 0.0
      %1811 = vmatpush1.msra.mxu0 0.0
      %1812 = vmatprep.subr.mxu0 0.0
      %1813 = vmatpush1.msra.mxu0 0.0
      %1814 = vmatprep.subr.mxu0 0.0
      %1815 = vmatpush1.msra.mxu0 0.0
      %1816 = vmatprep.subr.mxu0 0.0
      %1817 = vmatpush1.msra.mxu0 %v1731
      %1818 = vmatprep.subr.mxu0 0.0
      %1819 = vmatpush1.msra.mxu0 %v1680
      %1820 = vmatprep.subr.mxu0 0.0
      %1821 = vmatpush1.msra.mxu0 %v1677
      %1822 = vmatprep.subr.mxu0 0.0
      %1823 = vmatpush1.msra.mxu0 %v1674
      %1824 = vmatprep.subr.mxu0 0.0
      %1825 = vmatpush1.msra.mxu0 %v1671
      %1826 = vmatprep.subr.mxu0 0.0
      %1827 = vmatpush1.msra.mxu0 %v1668
      %1828 = vmatprep.subr.mxu0 0.0
      %1829 = vmatpush1.msra.mxu0 %v1665
      %1830 = vmatprep.subr.mxu0 0.0
      %1831 = vmatpush1.msra.mxu0 %v1662
      %1832 = vmatprep.subr.mxu0 0.0
      %1833 = vmatpush1.msra.mxu0 %v1659
      %1834 = vmatprep.subr.mxu0 0.0
      %1835 = vmatpush1.msra.mxu0 %v1656
      %1836 = vmatprep.subr.mxu0 0.0
      %1837 = vmatpush1.msra.mxu0 %v1653
      %1838 = vmatprep.subr.mxu0 0.0
      %1839 = vmatpush1.msra.mxu0 %v1650
      %1840 = vmatprep.subr.mxu0 0.0
      %1841 = vmatpush1.msra.mxu0 %v1647
      %1842 = vmatprep.subr.mxu0 0.0
      %1843 = vmatpush2.msra.mxu0 0.0
      %1844 = vmatprep.subr.mxu0 0.0
      %1845 = vmatpush2.msra.mxu0 0.0
      %1846 = vmatprep.subr.mxu0 0.0
      %1847 = vmatpush2.msra.mxu0 0.0
      %1848 = vmatprep.subr.mxu0 0.0
      %1849 = vmatpush2.msra.mxu0 0.0
      %1850 = vmatprep.subr.mxu0 0.0
      %1851 = vmatpush2.msra.mxu0 0.0
      %1852 = vmatprep.subr.mxu0 0.0
      %1853 = vmatpush2.msra.mxu0 0.0
      %1854 = vmatprep.subr.mxu0 0.0
      %1855 = vmatpush2.msra.mxu0 0.0
      %1856 = vmatprep.subr.mxu0 0.0
      %1857 = vmatpush2.msra.mxu0 0.0
      %1858 = vmatprep.subr.mxu0 0.0
      %1859 = vmatpush2.msra.mxu0 0.0
      %1860 = vmatprep.subr.mxu0 0.0
      %1861 = vmatpush2.msra.mxu0 0.0
      %1862 = vmatprep.subr.mxu0 0.0
      %1863 = vmatpush2.msra.mxu0 0.0
      %1864 = vmatprep.subr.mxu0 0.0
      %1865 = vmatpush2.msra.mxu0 0.0
      %1866 = vmatprep.subr.mxu0 0.0
      %1867 = vmatpush2.msra.mxu0 0.0
      %1868 = vmatprep.subr.mxu0 0.0
      %1869 = vmatpush2.msra.mxu0 0.0
      %1870 = vmatprep.subr.mxu0 0.0
      %1871 = vmatpush2.msra.mxu0 0.0
      %1872 = vmatprep.subr.mxu0 0.0
      %1873 = vmatpush2.msra.mxu0 0.0
      %1874 = vmatprep.mubr.f32.mxu0 0.0
      %1875 = vmatmul.mubr.f32.gmra.mxu0 %v1722
      %v1876 = vpop.f32.mrf.mxu0
      %v1877 = vadd.f32 %v1517, %v1876
      %v1878 = vpop.f32.mrf.mxu0
      %1879 = vmatprep.mubr.f32.mxu0 0.0
      %1880 = vmatmul.mubr.f32.gmra.mxu0 %v1725
      %v1881 = vpop.f32.mrf.mxu0
      %v1882 = vadd.f32 %v1522, %v1881
      %v1883 = vpop.f32.mrf.mxu0
      %1884 = vdwg.mxu0
      %v1885 = vmax.f32 %v1800, 0.0
      %v1886 = vmax.f32 %v1802, 0.0
      %v1887 = vmax.f32 %v1877, 0.0
      %v1888 = vmax.f32 %v1806, 0.0
      %v1889 = vmax.f32 %v1808, 0.0
      %v1890 = vmax.f32 %v1882, 0.0
      %1897 = vrot.lane.b32.xlu0 %v1885, 32
      %v1898 = vpop.permute.xlu0 %1897
      %1899 = vrot.lane.b32.xlu0 %v1886, 32
      %v1900 = vpop.permute.xlu0 %1899
      %1901 = vrot.lane.b32.xlu0 %v1887, 32
      %v1902 = vpop.permute.xlu0 %1901
      %1903 = vrot.lane.b32.xlu0 %v1888, 32
      %v1904 = vpop.permute.xlu0 %1903
      %1905 = vrot.lane.b32.xlu0 %v1889, 32
      %v1906 = vpop.permute.xlu0 %1905
      %1907 = vrot.lane.b32.xlu0 %v1890, 32
      %v1908 = vpop.permute.xlu0 %1907
      %v1909 = vsel %vm472, %v1898, %v1900
      %v1910 = vsel %vm472, %v1900, %v1902
      %v1911 = vsel %vm472, %v1904, %v1906
      %v1912 = vsel %vm472, %v1906, %v1908
      %v1921 = vsel %vm472, 0.0, %v1898
      %v1922 = vsel %vm472, 0.0, %v1904
      %v1923 = vsel %vm472, %v1902, 0.0
      %v1924 = vsel %vm472, %v1908, 0.0
      %1929 = vrot.lane.b32.xlu0 %v1921, 112
      %v1930 = vpop.permute.xlu0 %1929
      %1931 = vrot.lane.b32.xlu0 %v1909, 112
      %v1932 = vpop.permute.xlu0 %1931
      %1933 = vrot.lane.b32.xlu0 %v1910, 112
      %v1934 = vpop.permute.xlu0 %1933
      %1935 = vrot.lane.b32.xlu0 %v1923, 112
      %v1936 = vpop.permute.xlu0 %1935
      %1937 = vrot.lane.b32.xlu0 %v1922, 112
      %v1938 = vpop.permute.xlu0 %1937
      %1939 = vrot.lane.b32.xlu0 %v1911, 112
      %v1940 = vpop.permute.xlu0 %1939
      %1941 = vrot.lane.b32.xlu0 %v1912, 112
      %v1942 = vpop.permute.xlu0 %1941
      %1943 = vrot.lane.b32.xlu0 %v1924, 112
      %v1944 = vpop.permute.xlu0 %1943
      %v1945 = vsel %vm1052, %v1930, %v1932
      %v1946 = vsel %vm1052, %v1932, %v1934
      %v1947 = vsel %vm1052, %v1934, %v1936
      %v1948 = vsel %vm1052, %v1938, %v1940
      %v1949 = vsel %vm1052, %v1940, %v1942
      %v1950 = vsel %vm1052, %v1942, %v1944
      %1959 = vrot.lane.b32.xlu0 %v1921, 96
      %v1960 = vpop.permute.xlu0 %1959
      %1961 = vrot.lane.b32.xlu0 %v1909, 96
      %v1962 = vpop.permute.xlu0 %1961
      %1963 = vrot.lane.b32.xlu0 %v1910, 96
      %v1964 = vpop.permute.xlu0 %1963
      %1965 = vrot.lane.b32.xlu0 %v1923, 96
      %v1966 = vpop.permute.xlu0 %1965
      %1967 = vrot.lane.b32.xlu0 %v1922, 96
      %v1968 = vpop.permute.xlu0 %1967
      %1969 = vrot.lane.b32.xlu0 %v1911, 96
      %v1970 = vpop.permute.xlu0 %1969
      %1971 = vrot.lane.b32.xlu0 %v1912, 96
      %v1972 = vpop.permute.xlu0 %1971
      %1973 = vrot.lane.b32.xlu0 %v1924, 96
      %v1974 = vpop.permute.xlu0 %1973
      %v1975 = vsel %vm1068, %v1960, %v1962
      %v1976 = vsel %vm1068, %v1962, %v1964
      %v1977 = vsel %vm1068, %v1964, %v1966
      %v1978 = vsel %vm1068, %v1968, %v1970
      %v1979 = vsel %vm1068, %v1970, %v1972
      %v1980 = vsel %vm1068, %v1972, %v1974
      %v1989 = vlaneseq
      %v1990 = vshrl.u32 %v1989, 7
      %v1991 = vsub.s32 4, %v1990
      %v1992 = vrot.slane %v439, %v1991
      %v1993 = vlaneseq
      %v1994 = vshrl.u32 %v1993, 7
      %v1995 = vsub.s32 4, %v1994
      %v1996 = vrot.slane %v440, %v1995
      %v1997 = vlaneseq
      %v1998 = vshrl.u32 %v1997, 7
      %v1999 = vsub.s32 4, %v1998
      %v2000 = vrot.slane %v441, %v1999
      %2004 = vrot.lane.b32.xlu0 %v1992, 15
      %v2005 = vpop.permute.xlu0 %2004
      %2006 = vrot.lane.b32.xlu0 %v1996, 15
      %v2007 = vpop.permute.xlu0 %2006
      %2008 = vrot.lane.b32.xlu0 %v2000, 15
      %v2009 = vpop.permute.xlu0 %2008
      %v2010 = vsel %vm1175, %v2005, %v2007
      %v2011 = vsel %vm1175, %v2007, %v2009
      %v2016 = vmul.f32 %v1921, %v2005
      %v2017 = vmul.f32 %v1909, %v2010
      %v2018 = vmul.f32 %v1910, %v2011
      %v2019 = vmul.f32 %v1923, %v2009
      %v2020 = vmul.f32 %v1922, %v2005
      %v2021 = vmul.f32 %v1911, %v2010
      %v2022 = vmul.f32 %v1912, %v2011
      %v2023 = vmul.f32 %v1924, %v2009
      %v2024 = vmul.f32 %v1945, %v2005
      %v2025 = vmul.f32 %v1946, %v2010
      %v2026 = vmul.f32 %v1947, %v2011
      %v2027 = vmul.f32 %v1936, %v2009
      %v2028 = vmul.f32 %v1948, %v2005
      %v2029 = vmul.f32 %v1949, %v2010
      %v2030 = vmul.f32 %v1950, %v2011
      %v2031 = vmul.f32 %v1944, %v2009
      %v2032 = vmul.f32 %v1975, %v2005
      %v2033 = vmul.f32 %v1976, %v2010
      %v2034 = vmul.f32 %v1977, %v2011
      %v2035 = vmul.f32 %v1966, %v2009
      %v2036 = vmul.f32 %v1978, %v2005
      %v2037 = vmul.f32 %v1979, %v2010
      %v2038 = vmul.f32 %v1980, %v2011
      %v2039 = vmul.f32 %v1974, %v2009
      %v2040 = vlaneseq
      %v2041 = vshrl.u32 %v2040, 7
      %v2042 = vsub.s32 5, %v2041
      %v2043 = vrot.slane %v439, %v2042
      %v2044 = vlaneseq
      %v2045 = vshrl.u32 %v2044, 7
      %v2046 = vsub.s32 5, %v2045
      %v2047 = vrot.slane %v440, %v2046
      %v2048 = vlaneseq
      %v2049 = vshrl.u32 %v2048, 7
      %v2050 = vsub.s32 5, %v2049
      %v2051 = vrot.slane %v441, %v2050
      %2055 = vrot.lane.b32.xlu0 %v2043, 17
      %v2056 = vpop.permute.xlu0 %2055
      %2057 = vrot.lane.b32.xlu0 %v2047, 17
      %v2058 = vpop.permute.xlu0 %2057
      %2059 = vrot.lane.b32.xlu0 %v2051, 17
      %v2060 = vpop.permute.xlu0 %2059
      %v2061 = vsel %vm1215, %v2056, %v2058
      %v2062 = vsel %vm1215, %v2058, %v2060
      %v2067 = vmul.f32 %v1921, %v2056
      %v2068 = vmul.f32 %v1909, %v2061
      %v2069 = vmul.f32 %v1910, %v2062
      %v2070 = vmul.f32 %v1923, %v2060
      %v2071 = vmul.f32 %v1922, %v2056
      %v2072 = vmul.f32 %v1911, %v2061
      %v2073 = vmul.f32 %v1912, %v2062
      %v2074 = vmul.f32 %v1924, %v2060
      %v2075 = vmul.f32 %v1945, %v2056
      %v2076 = vmul.f32 %v1946, %v2061
      %v2077 = vmul.f32 %v1947, %v2062
      %v2078 = vmul.f32 %v1936, %v2060
      %v2079 = vmul.f32 %v1948, %v2056
      %v2080 = vmul.f32 %v1949, %v2061
      %v2081 = vmul.f32 %v1950, %v2062
      %v2082 = vmul.f32 %v1944, %v2060
      %v2083 = vmul.f32 %v1975, %v2056
      %v2084 = vmul.f32 %v1976, %v2061
      %v2085 = vmul.f32 %v1977, %v2062
      %v2086 = vmul.f32 %v1966, %v2060
      %v2087 = vmul.f32 %v1978, %v2056
      %v2088 = vmul.f32 %v1979, %v2061
      %v2089 = vmul.f32 %v1980, %v2062
      %v2090 = vmul.f32 %v1974, %v2060
      %2091 = vrot.lane.b32.xlu0 %v1921, 127
      %v2092 = vpop.permute.xlu0 %2091
      %2093 = vrot.lane.b32.xlu0 %v1909, 127
      %v2094 = vpop.permute.xlu0 %2093
      %2095 = vrot.lane.b32.xlu0 %v1910, 127
      %v2096 = vpop.permute.xlu0 %2095
      %2097 = vrot.lane.b32.xlu0 %v1923, 127
      %v2098 = vpop.permute.xlu0 %2097
      %2099 = vrot.lane.b32.xlu0 %v1922, 127
      %v2100 = vpop.permute.xlu0 %2099
      %2101 = vrot.lane.b32.xlu0 %v1911, 127
      %v2102 = vpop.permute.xlu0 %2101
      %2103 = vrot.lane.b32.xlu0 %v1912, 127
      %v2104 = vpop.permute.xlu0 %2103
      %2105 = vrot.lane.b32.xlu0 %v1924, 127
      %v2106 = vpop.permute.xlu0 %2105
      %2107 = vrot.lane.b32.xlu0 %v1945, 127
      %v2108 = vpop.permute.xlu0 %2107
      %2109 = vrot.lane.b32.xlu0 %v1946, 127
      %v2110 = vpop.permute.xlu0 %2109
      %2111 = vrot.lane.b32.xlu0 %v1947, 127
      %v2112 = vpop.permute.xlu0 %2111
      %2113 = vrot.lane.b32.xlu0 %v1936, 127
      %v2114 = vpop.permute.xlu0 %2113
      %2115 = vrot.lane.b32.xlu0 %v1948, 127
      %v2116 = vpop.permute.xlu0 %2115
      %2117 = vrot.lane.b32.xlu0 %v1949, 127
      %v2118 = vpop.permute.xlu0 %2117
      %2119 = vrot.lane.b32.xlu0 %v1950, 127
      %v2120 = vpop.permute.xlu0 %2119
      %2121 = vrot.lane.b32.xlu0 %v1944, 127
      %v2122 = vpop.permute.xlu0 %2121
      %2123 = vrot.lane.b32.xlu0 %v1975, 127
      %v2124 = vpop.permute.xlu0 %2123
      %2125 = vrot.lane.b32.xlu0 %v1976, 127
      %v2126 = vpop.permute.xlu0 %2125
      %2127 = vrot.lane.b32.xlu0 %v1977, 127
      %v2128 = vpop.permute.xlu0 %2127
      %2129 = vrot.lane.b32.xlu0 %v1966, 127
      %v2130 = vpop.permute.xlu0 %2129
      %2131 = vrot.lane.b32.xlu0 %v1978, 127
      %v2132 = vpop.permute.xlu0 %2131
      %2133 = vrot.lane.b32.xlu0 %v1979, 127
      %v2134 = vpop.permute.xlu0 %2133
      %2135 = vrot.lane.b32.xlu0 %v1980, 127
      %v2136 = vpop.permute.xlu0 %2135
      %2137 = vrot.lane.b32.xlu0 %v1974, 127
      %v2138 = vpop.permute.xlu0 %2137
      %v2139 = vsel %vm640, %v2092, %v2094
      %v2140 = vsel %vm640, %v2094, %v2096
      %v2141 = vsel %vm640, %v2096, %v2098
      %v2142 = vsel %vm640, %v2100, %v2102
      %v2143 = vsel %vm640, %v2102, %v2104
      %v2144 = vsel %vm640, %v2104, %v2106
      %v2145 = vsel %vm640, %v2108, %v2110
      %v2146 = vsel %vm640, %v2110, %v2112
      %v2147 = vsel %vm640, %v2112, %v2114
      %v2148 = vsel %vm640, %v2116, %v2118
      %v2149 = vsel %vm640, %v2118, %v2120
      %v2150 = vsel %vm640, %v2120, %v2122
      %v2151 = vsel %vm640, %v2124, %v2126
      %v2152 = vsel %vm640, %v2126, %v2128
      %v2153 = vsel %vm640, %v2128, %v2130
      %v2154 = vsel %vm640, %v2132, %v2134
      %v2155 = vsel %vm640, %v2134, %v2136
      %v2156 = vsel %vm640, %v2136, %v2138
      %2181 = vrot.lane.b32.xlu0 %v2067, 126
      %v2182 = vpop.permute.xlu0 %2181
      %2183 = vrot.lane.b32.xlu0 %v2068, 126
      %v2184 = vpop.permute.xlu0 %2183
      %2185 = vrot.lane.b32.xlu0 %v2069, 126
      %v2186 = vpop.permute.xlu0 %2185
      %2187 = vrot.lane.b32.xlu0 %v2070, 126
      %v2188 = vpop.permute.xlu0 %2187
      %2189 = vrot.lane.b32.xlu0 %v2071, 126
      %v2190 = vpop.permute.xlu0 %2189
      %2191 = vrot.lane.b32.xlu0 %v2072, 126
      %v2192 = vpop.permute.xlu0 %2191
      %2193 = vrot.lane.b32.xlu0 %v2073, 126
      %v2194 = vpop.permute.xlu0 %2193
      %2195 = vrot.lane.b32.xlu0 %v2074, 126
      %v2196 = vpop.permute.xlu0 %2195
      %2197 = vrot.lane.b32.xlu0 %v2075, 126
      %v2198 = vpop.permute.xlu0 %2197
      %2199 = vrot.lane.b32.xlu0 %v2076, 126
      %v2200 = vpop.permute.xlu0 %2199
      %2201 = vrot.lane.b32.xlu0 %v2077, 126
      %v2202 = vpop.permute.xlu0 %2201
      %2203 = vrot.lane.b32.xlu0 %v2078, 126
      %v2204 = vpop.permute.xlu0 %2203
      %2205 = vrot.lane.b32.xlu0 %v2079, 126
      %v2206 = vpop.permute.xlu0 %2205
      %2207 = vrot.lane.b32.xlu0 %v2080, 126
      %v2208 = vpop.permute.xlu0 %2207
      %2209 = vrot.lane.b32.xlu0 %v2081, 126
      %v2210 = vpop.permute.xlu0 %2209
      %2211 = vrot.lane.b32.xlu0 %v2082, 126
      %v2212 = vpop.permute.xlu0 %2211
      %2213 = vrot.lane.b32.xlu0 %v2083, 126
      %v2214 = vpop.permute.xlu0 %2213
      %2215 = vrot.lane.b32.xlu0 %v2084, 126
      %v2216 = vpop.permute.xlu0 %2215
      %2217 = vrot.lane.b32.xlu0 %v2085, 126
      %v2218 = vpop.permute.xlu0 %2217
      %2219 = vrot.lane.b32.xlu0 %v2086, 126
      %v2220 = vpop.permute.xlu0 %2219
      %2221 = vrot.lane.b32.xlu0 %v2087, 126
      %v2222 = vpop.permute.xlu0 %2221
      %2223 = vrot.lane.b32.xlu0 %v2088, 126
      %v2224 = vpop.permute.xlu0 %2223
      %2225 = vrot.lane.b32.xlu0 %v2089, 126
      %v2226 = vpop.permute.xlu0 %2225
      %2227 = vrot.lane.b32.xlu0 %v2090, 126
      %v2228 = vpop.permute.xlu0 %2227
      %v2229 = vsel %vm656, %v2182, %v2184
      %v2230 = vsel %vm656, %v2184, %v2186
      %v2231 = vsel %vm656, %v2186, %v2188
      %v2232 = vsel %vm656, %v2190, %v2192
      %v2233 = vsel %vm656, %v2192, %v2194
      %v2234 = vsel %vm656, %v2194, %v2196
      %v2235 = vsel %vm656, %v2198, %v2200
      %v2236 = vsel %vm656, %v2200, %v2202
      %v2237 = vsel %vm656, %v2202, %v2204
      %v2238 = vsel %vm656, %v2206, %v2208
      %v2239 = vsel %vm656, %v2208, %v2210
      %v2240 = vsel %vm656, %v2210, %v2212
      %v2241 = vsel %vm656, %v2214, %v2216
      %v2242 = vsel %vm656, %v2216, %v2218
      %v2243 = vsel %vm656, %v2218, %v2220
      %v2244 = vsel %vm656, %v2222, %v2224
      %v2245 = vsel %vm656, %v2224, %v2226
      %v2246 = vsel %vm656, %v2226, %v2228
      %v2247 = vld [vmem:[%s8] sm:$0xff]
      %v2248 = vld [vmem:[%s8 + $0x8] sm:$0xff]
      %v2249 = vld [vmem:[%s8 + $0x10] sm:$0xff]
      %v2250 = vld [vmem:[%s8 + $0x18] sm:$0xff]
      %v2251 = vld [vmem:[%s8 + $0x20] sm:$0xff]
      %v2252 = vld [vmem:[%s8 + $0x28] sm:$0xff]
      %v2253 = vld [vmem:[%s9] sm:$0xff]
      %v2254 = vld [vmem:[%s9 + $0x8] sm:$0xff]
      %v2255 = vld [vmem:[%s9 + $0x10] sm:$0xff]
      %2257 = vset.pattern.permute.xlu0 0
      %2258 = vperm.xlu0 %2257, %v2253
      %v2259 = vpop.permute.xlu0 %2258
      %2262 = vset.pattern.permute.xlu0 0
      %2263 = vperm.xlu0 %2262, %v2254
      %v2264 = vpop.permute.xlu0 %2263
      %2267 = vset.pattern.permute.xlu0 0
      %2268 = vperm.xlu0 %2267, %v2255
      %v2269 = vpop.permute.xlu0 %2268
      %2295 = vrot.lane.b32.xlu0 %v2016, 113
      %v2296 = vpop.permute.xlu0 %2295
      %2297 = vrot.lane.b32.xlu0 %v2017, 113
      %v2298 = vpop.permute.xlu0 %2297
      %2299 = vrot.lane.b32.xlu0 %v2018, 113
      %v2300 = vpop.permute.xlu0 %2299
      %2301 = vrot.lane.b32.xlu0 %v2019, 113
      %v2302 = vpop.permute.xlu0 %2301
      %2303 = vrot.lane.b32.xlu0 %v2020, 113
      %v2304 = vpop.permute.xlu0 %2303
      %2305 = vrot.lane.b32.xlu0 %v2021, 113
      %v2306 = vpop.permute.xlu0 %2305
      %2307 = vrot.lane.b32.xlu0 %v2022, 113
      %v2308 = vpop.permute.xlu0 %2307
      %2309 = vrot.lane.b32.xlu0 %v2023, 113
      %v2310 = vpop.permute.xlu0 %2309
      %2311 = vrot.lane.b32.xlu0 %v2024, 113
      %v2312 = vpop.permute.xlu0 %2311
      %2313 = vrot.lane.b32.xlu0 %v2025, 113
      %v2314 = vpop.permute.xlu0 %2313
      %2315 = vrot.lane.b32.xlu0 %v2026, 113
      %v2316 = vpop.permute.xlu0 %2315
      %2317 = vrot.lane.b32.xlu0 %v2027, 113
      %v2318 = vpop.permute.xlu0 %2317
      %2319 = vrot.lane.b32.xlu0 %v2028, 113
      %v2320 = vpop.permute.xlu0 %2319
      %2321 = vrot.lane.b32.xlu0 %v2029, 113
      %v2322 = vpop.permute.xlu0 %2321
      %2323 = vrot.lane.b32.xlu0 %v2030, 113
      %v2324 = vpop.permute.xlu0 %2323
      %2325 = vrot.lane.b32.xlu0 %v2031, 113
      %v2326 = vpop.permute.xlu0 %2325
      %2327 = vrot.lane.b32.xlu0 %v2032, 113
      %v2328 = vpop.permute.xlu0 %2327
      %2329 = vrot.lane.b32.xlu0 %v2033, 113
      %v2330 = vpop.permute.xlu0 %2329
      %2331 = vrot.lane.b32.xlu0 %v2034, 113
      %v2332 = vpop.permute.xlu0 %2331
      %2333 = vrot.lane.b32.xlu0 %v2035, 113
      %v2334 = vpop.permute.xlu0 %2333
      %2335 = vrot.lane.b32.xlu0 %v2036, 113
      %v2336 = vpop.permute.xlu0 %2335
      %2337 = vrot.lane.b32.xlu0 %v2037, 113
      %v2338 = vpop.permute.xlu0 %2337
      %2339 = vrot.lane.b32.xlu0 %v2038, 113
      %v2340 = vpop.permute.xlu0 %2339
      %2341 = vrot.lane.b32.xlu0 %v2039, 113
      %v2342 = vpop.permute.xlu0 %2341
      %2343 = vrot.lane.b32.xlu0 %v2139, 113
      %v2344 = vpop.permute.xlu0 %2343
      %2345 = vrot.lane.b32.xlu0 %v2140, 113
      %v2346 = vpop.permute.xlu0 %2345
      %2347 = vrot.lane.b32.xlu0 %v2141, 113
      %v2348 = vpop.permute.xlu0 %2347
      %2349 = vrot.lane.b32.xlu0 %v2098, 113
      %v2350 = vpop.permute.xlu0 %2349
      %2351 = vrot.lane.b32.xlu0 %v2142, 113
      %v2352 = vpop.permute.xlu0 %2351
      %2353 = vrot.lane.b32.xlu0 %v2143, 113
      %v2354 = vpop.permute.xlu0 %2353
      %2355 = vrot.lane.b32.xlu0 %v2144, 113
      %v2356 = vpop.permute.xlu0 %2355
      %2357 = vrot.lane.b32.xlu0 %v2106, 113
      %v2358 = vpop.permute.xlu0 %2357
      %2359 = vrot.lane.b32.xlu0 %v2145, 113
      %v2360 = vpop.permute.xlu0 %2359
      %2361 = vrot.lane.b32.xlu0 %v2146, 113
      %v2362 = vpop.permute.xlu0 %2361
      %2363 = vrot.lane.b32.xlu0 %v2147, 113
      %v2364 = vpop.permute.xlu0 %2363
      %2365 = vrot.lane.b32.xlu0 %v2114, 113
      %v2366 = vpop.permute.xlu0 %2365
      %2367 = vrot.lane.b32.xlu0 %v2148, 113
      %v2368 = vpop.permute.xlu0 %2367
      %2369 = vrot.lane.b32.xlu0 %v2149, 113
      %v2370 = vpop.permute.xlu0 %2369
      %2371 = vrot.lane.b32.xlu0 %v2150, 113
      %v2372 = vpop.permute.xlu0 %2371
      %2373 = vrot.lane.b32.xlu0 %v2122, 113
      %v2374 = vpop.permute.xlu0 %2373
      %2375 = vrot.lane.b32.xlu0 %v2151, 113
      %v2376 = vpop.permute.xlu0 %2375
      %2377 = vrot.lane.b32.xlu0 %v2152, 113
      %v2378 = vpop.permute.xlu0 %2377
      %2379 = vrot.lane.b32.xlu0 %v2153, 113
      %v2380 = vpop.permute.xlu0 %2379
      %2381 = vrot.lane.b32.xlu0 %v2130, 113
      %v2382 = vpop.permute.xlu0 %2381
      %2383 = vrot.lane.b32.xlu0 %v2154, 113
      %v2384 = vpop.permute.xlu0 %2383
      %2385 = vrot.lane.b32.xlu0 %v2155, 113
      %v2386 = vpop.permute.xlu0 %2385
      %2387 = vrot.lane.b32.xlu0 %v2156, 113
      %v2388 = vpop.permute.xlu0 %2387
      %2389 = vrot.lane.b32.xlu0 %v2138, 113
      %v2390 = vpop.permute.xlu0 %2389
      %2391 = vrot.lane.b32.xlu0 %v2229, 113
      %v2392 = vpop.permute.xlu0 %2391
      %2393 = vrot.lane.b32.xlu0 %v2230, 113
      %v2394 = vpop.permute.xlu0 %2393
      %2395 = vrot.lane.b32.xlu0 %v2231, 113
      %v2396 = vpop.permute.xlu0 %2395
      %2397 = vrot.lane.b32.xlu0 %v2188, 113
      %v2398 = vpop.permute.xlu0 %2397
      %2399 = vrot.lane.b32.xlu0 %v2232, 113
      %v2400 = vpop.permute.xlu0 %2399
      %2401 = vrot.lane.b32.xlu0 %v2233, 113
      %v2402 = vpop.permute.xlu0 %2401
      %2403 = vrot.lane.b32.xlu0 %v2234, 113
      %v2404 = vpop.permute.xlu0 %2403
      %2405 = vrot.lane.b32.xlu0 %v2196, 113
      %v2406 = vpop.permute.xlu0 %2405
      %2407 = vrot.lane.b32.xlu0 %v2235, 113
      %v2408 = vpop.permute.xlu0 %2407
      %2409 = vrot.lane.b32.xlu0 %v2236, 113
      %v2410 = vpop.permute.xlu0 %2409
      %2411 = vrot.lane.b32.xlu0 %v2237, 113
      %v2412 = vpop.permute.xlu0 %2411
      %2413 = vrot.lane.b32.xlu0 %v2204, 113
      %v2414 = vpop.permute.xlu0 %2413
      %2415 = vrot.lane.b32.xlu0 %v2238, 113
      %v2416 = vpop.permute.xlu0 %2415
      %2417 = vrot.lane.b32.xlu0 %v2239, 113
      %v2418 = vpop.permute.xlu0 %2417
      %2419 = vrot.lane.b32.xlu0 %v2240, 113
      %v2420 = vpop.permute.xlu0 %2419
      %2421 = vrot.lane.b32.xlu0 %v2212, 113
      %v2422 = vpop.permute.xlu0 %2421
      %2423 = vrot.lane.b32.xlu0 %v2241, 113
      %v2424 = vpop.permute.xlu0 %2423
      %2425 = vrot.lane.b32.xlu0 %v2242, 113
      %v2426 = vpop.permute.xlu0 %2425
      %2427 = vrot.lane.b32.xlu0 %v2243, 113
      %v2428 = vpop.permute.xlu0 %2427
      %2429 = vrot.lane.b32.xlu0 %v2220, 113
      %v2430 = vpop.permute.xlu0 %2429
      %2431 = vrot.lane.b32.xlu0 %v2244, 113
      %v2432 = vpop.permute.xlu0 %2431
      %2433 = vrot.lane.b32.xlu0 %v2245, 113
      %v2434 = vpop.permute.xlu0 %2433
      %2435 = vrot.lane.b32.xlu0 %v2246, 113
      %v2436 = vpop.permute.xlu0 %2435
      %2437 = vrot.lane.b32.xlu0 %v2228, 113
      %v2438 = vpop.permute.xlu0 %2437
      %vm2439 = vcmask 924672
      %v2440 = vsel %vm2439, %v2296, %v2298
      %v2441 = vsel %vm2439, %v2298, %v2300
      %v2442 = vsel %vm2439, %v2300, %v2302
      %v2443 = vsel %vm2439, %v2304, %v2306
      %v2444 = vsel %vm2439, %v2306, %v2308
      %v2445 = vsel %vm2439, %v2308, %v2310
      %v2446 = vsel %vm2439, %v2312, %v2314
      %v2447 = vsel %vm2439, %v2314, %v2316
      %v2448 = vsel %vm2439, %v2316, %v2318
      %v2449 = vsel %vm2439, %v2320, %v2322
      %v2450 = vsel %vm2439, %v2322, %v2324
      %v2451 = vsel %vm2439, %v2324, %v2326
      %v2452 = vsel %vm2439, %v2328, %v2330
      %v2453 = vsel %vm2439, %v2330, %v2332
      %v2454 = vsel %vm2439, %v2332, %v2334
      %v2455 = vsel %vm2439, %v2336, %v2338
      %v2456 = vsel %vm2439, %v2338, %v2340
      %v2457 = vsel %vm2439, %v2340, %v2342
      %v2458 = vsel %vm2439, %v2344, %v2346
      %v2459 = vsel %vm2439, %v2346, %v2348
      %v2460 = vsel %vm2439, %v2348, %v2350
      %v2461 = vsel %vm2439, %v2352, %v2354
      %v2462 = vsel %vm2439, %v2354, %v2356
      %v2463 = vsel %vm2439, %v2356, %v2358
      %v2464 = vsel %vm2439, %v2360, %v2362
      %v2465 = vsel %vm2439, %v2362, %v2364
      %v2466 = vsel %vm2439, %v2364, %v2366
      %v2467 = vsel %vm2439, %v2368, %v2370
      %v2468 = vsel %vm2439, %v2370, %v2372
      %v2469 = vsel %vm2439, %v2372, %v2374
      %v2470 = vsel %vm2439, %v2376, %v2378
      %v2471 = vsel %vm2439, %v2378, %v2380
      %v2472 = vsel %vm2439, %v2380, %v2382
      %v2473 = vsel %vm2439, %v2384, %v2386
      %v2474 = vsel %vm2439, %v2386, %v2388
      %v2475 = vsel %vm2439, %v2388, %v2390
      %v2476 = vsel %vm2439, %v2392, %v2394
      %v2477 = vsel %vm2439, %v2394, %v2396
      %v2478 = vsel %vm2439, %v2396, %v2398
      %v2479 = vsel %vm2439, %v2400, %v2402
      %v2480 = vsel %vm2439, %v2402, %v2404
      %v2481 = vsel %vm2439, %v2404, %v2406
      %v2482 = vsel %vm2439, %v2408, %v2410
      %v2483 = vsel %vm2439, %v2410, %v2412
      %v2484 = vsel %vm2439, %v2412, %v2414
      %v2485 = vsel %vm2439, %v2416, %v2418
      %v2486 = vsel %vm2439, %v2418, %v2420
      %v2487 = vsel %vm2439, %v2420, %v2422
      %v2488 = vsel %vm2439, %v2424, %v2426
      %v2489 = vsel %vm2439, %v2426, %v2428
      %v2490 = vsel %vm2439, %v2428, %v2430
      %v2491 = vsel %vm2439, %v2432, %v2434
      %v2492 = vsel %vm2439, %v2434, %v2436
      %v2493 = vsel %vm2439, %v2436, %v2438
      %v2549 = vsel %vm479, %v2248, 0
      %v2552 = vsel %vm479, %v2250, 0
      %v2555 = vsel %vm479, %v2252, 0
      %2557 = vmatprep.subr.mxu0 %v2486
      %2558 = vmatpush1.msra.mxu0 %v2485
      %2559 = vmatprep.subr.mxu0 %v2483
      %2560 = vmatpush1.msra.mxu0 %v2482
      %2561 = vmatprep.subr.mxu0 %v2480
      %2562 = vmatpush1.msra.mxu0 %v2479
      %2563 = vmatprep.subr.mxu0 %v2477
      %2564 = vmatpush1.msra.mxu0 %v2476
      %2565 = vmatprep.subr.mxu0 %v2474
      %2566 = vmatpush1.msra.mxu0 %v2473
      %2567 = vmatprep.subr.mxu0 %v2471
      %2568 = vmatpush1.msra.mxu0 %v2470
      %2569 = vmatprep.subr.mxu0 %v2468
      %2570 = vmatpush1.msra.mxu0 %v2467
      %2571 = vmatprep.subr.mxu0 %v2465
      %2572 = vmatpush1.msra.mxu0 %v2464
      %2573 = vmatprep.subr.mxu0 %v2462
      %2574 = vmatpush1.msra.mxu0 %v2461
      %2575 = vmatprep.subr.mxu0 %v2459
      %2576 = vmatpush1.msra.mxu0 %v2458
      %2577 = vmatprep.subr.mxu0 %v2456
      %2578 = vmatpush1.msra.mxu0 %v2455
      %2579 = vmatprep.subr.mxu0 %v2453
      %2580 = vmatpush1.msra.mxu0 %v2452
      %2581 = vmatprep.subr.mxu0 %v2450
      %2582 = vmatpush1.msra.mxu0 %v2449
      %2583 = vmatprep.subr.mxu0 %v2447
      %2584 = vmatpush1.msra.mxu0 %v2446
      %2585 = vmatprep.subr.mxu0 %v2444
      %2586 = vmatpush1.msra.mxu0 %v2443
      %2587 = vmatprep.subr.mxu0 %v2441
      %2588 = vmatpush1.msra.mxu0 %v2440
      %2589 = vmatprep.subr.mxu0 0.0
      %2590 = vmatpush2.msra.mxu0 0.0
      %2591 = vmatprep.subr.mxu0 0.0
      %2592 = vmatpush2.msra.mxu0 0.0
      %2593 = vmatprep.subr.mxu0 0.0
      %2594 = vmatpush2.msra.mxu0 0.0
      %2595 = vmatprep.subr.mxu0 0.0
      %2596 = vmatpush2.msra.mxu0 0.0
      %2597 = vmatprep.subr.mxu0 0.0
      %2598 = vmatpush2.msra.mxu0 0.0
      %2599 = vmatprep.subr.mxu0 0.0
      %2600 = vmatpush2.msra.mxu0 0.0
      %2601 = vmatprep.subr.mxu0 0.0
      %2602 = vmatpush2.msra.mxu0 0.0
      %2603 = vmatprep.subr.mxu0 0.0
      %2604 = vmatpush2.msra.mxu0 0.0
      %2605 = vmatprep.subr.mxu0 0.0
      %2606 = vmatpush2.msra.mxu0 0.0
      %2607 = vmatprep.subr.mxu0 0.0
      %2608 = vmatpush2.msra.mxu0 0.0
      %2609 = vmatprep.subr.mxu0 0.0
      %2610 = vmatpush2.msra.mxu0 0.0
      %2611 = vmatprep.subr.mxu0 0.0
      %2612 = vmatpush2.msra.mxu0 0.0
      %2613 = vmatprep.subr.mxu0 0.0
      %2614 = vmatpush2.msra.mxu0 0.0
      %2615 = vmatprep.subr.mxu0 0.0
      %2616 = vmatpush2.msra.mxu0 0.0
      %2617 = vmatprep.subr.mxu0 %v2492
      %2618 = vmatpush2.msra.mxu0 %v2491
      %2619 = vmatprep.subr.mxu0 %v2489
      %2620 = vmatpush2.msra.mxu0 %v2488
      %2621 = vmatprep.mubr.f32.mxu0 %v2549
      %2622 = vmatmul.mubr.f32.gmra.mxu0 %v2247
      %v2623 = vpop.f32.mrf.mxu0
      %v2624 = vadd.f32 %v2259, %v2623
      %v2625 = vpop.f32.mrf.mxu0
      %v2626 = vadd.f32 %v2259, %v2625
      %2627 = vmatprep.mubr.f32.mxu0 %v2552
      %2628 = vmatmul.mubr.f32.gmra.mxu0 %v2249
      %v2629 = vpop.f32.mrf.mxu0
      %v2630 = vadd.f32 %v2264, %v2629
      %v2631 = vpop.f32.mrf.mxu0
      %v2632 = vadd.f32 %v2264, %v2631
      %2633 = vmatprep.mubr.f32.mxu0 %v2555
      %2634 = vmatmul.mubr.f32.gmra.mxu0 %v2251
      %v2635 = vpop.f32.mrf.mxu0
      %v2636 = vadd.f32 %v2269, %v2635
      %v2637 = vpop.f32.mrf.mxu0
      %v2638 = vadd.f32 %v2269, %v2637
      %2639 = vdwg.mxu0
      %2640 = vmatprep.subr.mxu0 0.0
      %2641 = vmatpush1.msra.mxu0 %v2487
      %2642 = vmatprep.subr.mxu0 0.0
      %2643 = vmatpush1.msra.mxu0 %v2484
      %2644 = vmatprep.subr.mxu0 0.0
      %2645 = vmatpush1.msra.mxu0 %v2481
      %2646 = vmatprep.subr.mxu0 0.0
      %2647 = vmatpush1.msra.mxu0 %v2478
      %2648 = vmatprep.subr.mxu0 0.0
      %2649 = vmatpush1.msra.mxu0 %v2475
      %2650 = vmatprep.subr.mxu0 0.0
      %2651 = vmatpush1.msra.mxu0 %v2472
      %2652 = vmatprep.subr.mxu0 0.0
      %2653 = vmatpush1.msra.mxu0 %v2469
      %2654 = vmatprep.subr.mxu0 0.0
      %2655 = vmatpush1.msra.mxu0 %v2466
      %2656 = vmatprep.subr.mxu0 0.0
      %2657 = vmatpush1.msra.mxu0 %v2463
      %2658 = vmatprep.subr.mxu0 0.0
      %2659 = vmatpush1.msra.mxu0 %v2460
      %2660 = vmatprep.subr.mxu0 0.0
      %2661 = vmatpush1.msra.mxu0 %v2457
      %2662 = vmatprep.subr.mxu0 0.0
      %2663 = vmatpush1.msra.mxu0 %v2454
      %2664 = vmatprep.subr.mxu0 0.0
      %2665 = vmatpush1.msra.mxu0 %v2451
      %2666 = vmatprep.subr.mxu0 0.0
      %2667 = vmatpush1.msra.mxu0 %v2448
      %2668 = vmatprep.subr.mxu0 0.0
      %2669 = vmatpush1.msra.mxu0 %v2445
      %2670 = vmatprep.subr.mxu0 0.0
      %2671 = vmatpush1.msra.mxu0 %v2442
      %2672 = vmatprep.subr.mxu0 0.0
      %2673 = vmatpush2.msra.mxu0 0.0
      %2674 = vmatprep.subr.mxu0 0.0
      %2675 = vmatpush2.msra.mxu0 0.0
      %2676 = vmatprep.subr.mxu0 0.0
      %2677 = vmatpush2.msra.mxu0 0.0
      %2678 = vmatprep.subr.mxu0 0.0
      %2679 = vmatpush2.msra.mxu0 0.0
      %2680 = vmatprep.subr.mxu0 0.0
      %2681 = vmatpush2.msra.mxu0 0.0
      %2682 = vmatprep.subr.mxu0 0.0
      %2683 = vmatpush2.msra.mxu0 0.0
      %2684 = vmatprep.subr.mxu0 0.0
      %2685 = vmatpush2.msra.mxu0 0.0
      %2686 = vmatprep.subr.mxu0 0.0
      %2687 = vmatpush2.msra.mxu0 0.0
      %2688 = vmatprep.subr.mxu0 0.0
      %2689 = vmatpush2.msra.mxu0 0.0
      %2690 = vmatprep.subr.mxu0 0.0
      %2691 = vmatpush2.msra.mxu0 0.0
      %2692 = vmatprep.subr.mxu0 0.0
      %2693 = vmatpush2.msra.mxu0 0.0
      %2694 = vmatprep.subr.mxu0 0.0
      %2695 = vmatpush2.msra.mxu0 0.0
      %2696 = vmatprep.subr.mxu0 0.0
      %2697 = vmatpush2.msra.mxu0 0.0
      %2698 = vmatprep.subr.mxu0 0.0
      %2699 = vmatpush2.msra.mxu0 0.0
      %2700 = vmatprep.subr.mxu0 0.0
      %2701 = vmatpush2.msra.mxu0 %v2493
      %2702 = vmatprep.subr.mxu0 0.0
      %2703 = vmatpush2.msra.mxu0 %v2490
      %2704 = vmatprep.mubr.f32.mxu0 %v2549
      %2705 = vmatmul.mubr.f32.gmra.mxu0 %v2247
      %v2706 = vpop.f32.mrf.mxu0
      %v2707 = vadd.f32 %v2259, %v2706
      %v2708 = vpop.f32.mrf.mxu0
      %2709 = vmatprep.mubr.f32.mxu0 %v2552
      %2710 = vmatmul.mubr.f32.gmra.mxu0 %v2249
      %v2711 = vpop.f32.mrf.mxu0
      %v2712 = vadd.f32 %v2264, %v2711
      %v2713 = vpop.f32.mrf.mxu0
      %2714 = vmatprep.mubr.f32.mxu0 %v2555
      %2715 = vmatmul.mubr.f32.gmra.mxu0 %v2251
      %v2716 = vpop.f32.mrf.mxu0
      %v2717 = vadd.f32 %v2269, %v2716
      %v2718 = vpop.f32.mrf.mxu0
      %2719 = vdwg.mxu0
      %2730 = vrot.lane.b32.xlu0 %v2624, 127
      %v2731 = vpop.permute.xlu0 %2730
      %2732 = vrot.lane.b32.xlu0 %v2626, 127
      %v2733 = vpop.permute.xlu0 %2732
      %2734 = vrot.lane.b32.xlu0 %v2707, 127
      %v2735 = vpop.permute.xlu0 %2734
      %2736 = vrot.lane.b32.xlu0 0.0, 127
      %v2737 = vpop.permute.xlu0 %2736
      %2738 = vrot.lane.b32.xlu0 %v2630, 127
      %v2739 = vpop.permute.xlu0 %2738
      %2740 = vrot.lane.b32.xlu0 %v2632, 127
      %v2741 = vpop.permute.xlu0 %2740
      %2742 = vrot.lane.b32.xlu0 %v2712, 127
      %v2743 = vpop.permute.xlu0 %2742
      %2744 = vrot.lane.b32.xlu0 %v2636, 127
      %v2745 = vpop.permute.xlu0 %2744
      %2746 = vrot.lane.b32.xlu0 %v2638, 127
      %v2747 = vpop.permute.xlu0 %2746
      %2748 = vrot.lane.b32.xlu0 %v2717, 127
      %v2749 = vpop.permute.xlu0 %2748
      %v2750 = vsel %vm640, %v2731, %v2733
      %v2751 = vsel %vm640, %v2733, %v2735
      %v2752 = vsel %vm640, %v2735, %v2737
      %v2753 = vsel %vm640, %v2739, %v2741
      %v2754 = vsel %vm640, %v2741, %v2743
      %v2755 = vsel %vm640, %v2743, %v2737
      %v2756 = vsel %vm640, %v2745, %v2747
      %v2757 = vsel %vm640, %v2747, %v2749
      %v2758 = vsel %vm640, %v2749, %v2737
      %v2768 = vmax.f32 %v2624, %v2750
      %v2769 = vmax.f32 %v2626, %v2751
      %v2770 = vmax.f32 %v2707, %v2752
      %v2771 = vmax.f32 %v2630, %v2753
      %v2772 = vmax.f32 %v2632, %v2754
      %v2773 = vmax.f32 %v2712, %v2755
      %v2774 = vmax.f32 %v2636, %v2756
      %v2775 = vmax.f32 %v2638, %v2757
      %v2776 = vmax.f32 %v2717, %v2758
      %v2778 = vmax.f32 %v2737, 0.0
      %2789 = vrot.lane.b32.xlu0 %v2768, 112
      %v2790 = vpop.permute.xlu0 %2789
      %2791 = vrot.lane.b32.xlu0 %v2769, 112
      %v2792 = vpop.permute.xlu0 %2791
      %2793 = vrot.lane.b32.xlu0 %v2770, 112
      %v2794 = vpop.permute.xlu0 %2793
      %2795 = vrot.lane.b32.xlu0 %v2778, 112
      %v2796 = vpop.permute.xlu0 %2795
      %2797 = vrot.lane.b32.xlu0 %v2771, 112
      %v2798 = vpop.permute.xlu0 %2797
      %2799 = vrot.lane.b32.xlu0 %v2772, 112
      %v2800 = vpop.permute.xlu0 %2799
      %2801 = vrot.lane.b32.xlu0 %v2773, 112
      %v2802 = vpop.permute.xlu0 %2801
      %2803 = vrot.lane.b32.xlu0 %v2774, 112
      %v2804 = vpop.permute.xlu0 %2803
      %2805 = vrot.lane.b32.xlu0 %v2775, 112
      %v2806 = vpop.permute.xlu0 %2805
      %2807 = vrot.lane.b32.xlu0 %v2776, 112
      %v2808 = vpop.permute.xlu0 %2807
      %v2809 = vsel %vm1052, %v2790, %v2792
      %v2810 = vsel %vm1052, %v2792, %v2794
      %v2811 = vsel %vm1052, %v2794, %v2796
      %v2812 = vsel %vm1052, %v2798, %v2800
      %v2813 = vsel %vm1052, %v2800, %v2802
      %v2814 = vsel %vm1052, %v2802, %v2796
      %v2815 = vsel %vm1052, %v2804, %v2806
      %v2816 = vsel %vm1052, %v2806, %v2808
      %v2817 = vsel %vm1052, %v2808, %v2796
      %v2827 = vmax.f32 %v2768, %v2809
      %v2828 = vmax.f32 %v2769, %v2810
      %v2829 = vmax.f32 %v2770, %v2811
      %v2830 = vmax.f32 %v2771, %v2812
      %v2831 = vmax.f32 %v2772, %v2813
      %v2832 = vmax.f32 %v2773, %v2814
      %v2833 = vmax.f32 %v2774, %v2815
      %v2834 = vmax.f32 %v2775, %v2816
      %v2835 = vmax.f32 %v2776, %v2817
      %v2836 = vmax.f32 %v2827, 0.0
      %v2837 = vmax.f32 %v2828, 0.0
      %v2838 = vmax.f32 %v2829, 0.0
      %v2839 = vmax.f32 %v2830, 0.0
      %v2840 = vmax.f32 %v2831, 0.0
      %v2841 = vmax.f32 %v2832, 0.0
      %v2842 = vmax.f32 %v2833, 0.0
      %v2843 = vmax.f32 %v2834, 0.0
      %v2844 = vmax.f32 %v2835, 0.0
      %2845 = vst [vmem:[%s436] sm:$0xff] %v2836
      %2846 = vst [vmem:[%s436 + $0x8] sm:$0xff] %v2837
      %2847 = vst [vmem:[%s436 + $0x10] sm:$0xff] %v2838
      %2848 = vst [vmem:[%s436 + $0x18] sm:$0xff] %v2839
      %2849 = vst [vmem:[%s436 + $0x20] sm:$0xff] %v2840
      %2850 = vst [vmem:[%s436 + $0x28] sm:$0xff] %v2841
      %2851 = vst [vmem:[%s436 + $0x30] sm:$0xff] %v2842
      %2852 = vst [vmem:[%s436 + $0x38] sm:$0xff] %v2843
      %2853 = vst [vmem:[%s436 + $0x40] sm:$0xff] %v2844
      %p2854 = scmp.lt.s32.totalorder %s24, 1
      %s2855 = scalar_select %p2854, %s24, 1
      %s2856 = smul.addr %s2855, 8
      %s2857 = scalar_lea.vmem %s10, %s2856
      %p2858 = scmp.lt.s32.totalorder %s24, 1
      %s2859 = scalar_select %p2858, %s24, 1
      %s2860 = smul.addr %s2859, 3
      %s2861 = smul.addr %s2860, 8
      %s2862 = scalar_lea.vmem %s11, %s2861
      %p2863 = scmp.lt.s32.totalorder %s24, 1
      %s2864 = scalar_select %p2863, %s24, 1
      %s2865 = smul.addr %s2864, 9
      %s2866 = smul.addr %s2865, 8
      %s2867 = scalar_lea.vmem %s12, %s2866
      // Predicated region
      $region61: #{cnn_forward.1} parent=59 // pred_check
        %p2868 = pneg %p257
      $region62: #{cnn_forward.1} parent=59 // pred_check_branch
        %2870 = sbr.rel (%p2868) target = $region64
      $region63: #{cnn_forward.1} parent=59 // pred_region
        _
      $region64: #{cnn_forward.1} parent=59 // pred_fallthru
        _
      // Predicated region
      $region65: #{cnn_forward.1} parent=59 // pred_check
        %p2871 = pneg %p283
      $region66: #{cnn_forward.1} parent=59 // pred_check_branch
        %2873 = sbr.rel (%p2871) target = $region68
      $region67: #{cnn_forward.1} parent=59 // pred_region
        _
      $region68: #{cnn_forward.1} parent=59 // pred_fallthru
        _
      // Predicated region
      $region69: #{cnn_forward.1} parent=59 // pred_check
        %p2874 = pneg %p309
      $region70: #{cnn_forward.1} parent=59 // pred_check_branch
        %2876 = sbr.rel (%p2874) target = $region72
      $region71: #{cnn_forward.1} parent=59 // pred_region
        _
      $region72: #{cnn_forward.1} parent=59 // pred_fallthru
        _
    $region60: #{cnn_forward.1} parent=5 // pred_fallthru
      _
    %p2877 = scmp.le.s32.totalorder 2, %s19
    // Predicated region
    $region73: #{cnn_forward.1} parent=5 // pred_check
      %p2878 = pneg %p2877
    $region74: #{cnn_forward.1} parent=5 // pred_check_branch
      %2880 = sbr.rel (%p2878) target = $region76
    $region75: #{cnn_forward.1} parent=5 // pred_region
      %s2881 = ssub.s32 %s19, 2
      // Predicated region
      $region77: #{cnn_forward.1} parent=75 // pred_check
        %p2882 = pneg %p263
      $region78: #{cnn_forward.1} parent=75 // pred_check_branch
        %2884 = sbr.rel (%p2882) target = $region80
      $region79: #{cnn_forward.1} parent=75 // pred_region
        %p2885 = scmp.lt.s32.totalorder %s25, 1
        %s2886 = scalar_select %p2885, %s25, 1
        %s2887 = smul.addr %s2886, 8
        %s2888 = scalar_lea.vmem %s10, %s2887
      $region80: #{cnn_forward.1} parent=75 // pred_fallthru
        _
      // Predicated region
      $region81: #{cnn_forward.1} parent=75 // pred_check
        %p2889 = pneg %p289
      $region82: #{cnn_forward.1} parent=75 // pred_check_branch
        %2891 = sbr.rel (%p2889) target = $region84
      $region83: #{cnn_forward.1} parent=75 // pred_region
        %p2892 = scmp.lt.s32.totalorder %s25, 1
        %s2893 = scalar_select %p2892, %s25, 1
        %s2894 = smul.addr %s2893, 3
        %s2895 = smul.addr %s2894, 8
        %s2896 = scalar_lea.vmem %s11, %s2895
      $region84: #{cnn_forward.1} parent=75 // pred_fallthru
        _
      // Predicated region
      $region85: #{cnn_forward.1} parent=75 // pred_check
        %p2897 = pneg %p315
      $region86: #{cnn_forward.1} parent=75 // pred_check_branch
        %2899 = sbr.rel (%p2897) target = $region88
      $region87: #{cnn_forward.1} parent=75 // pred_region
        %p2900 = scmp.lt.s32.totalorder %s25, 1
        %s2901 = scalar_select %p2900, %s25, 1
        %s2902 = smul.addr %s2901, 9
        %s2903 = smul.addr %s2902, 8
        %s2904 = scalar_lea.vmem %s12, %s2903
      $region88: #{cnn_forward.1} parent=75 // pred_fallthru
        _
    $region76: #{cnn_forward.1} parent=5 // pred_fallthru
      _
  $region6: #{cnn_forward.1} parent=0 // loop_footer
    %s23 = sadd.s32 1, %s19
  $region7: #{cnn_forward.1} parent=0 // loop_footer_branch
    %18 = sbr.rel target = $region3
  $region8: #{cnn_forward.1} parent=0 // loop_exit
    _

</llo_original>
